<compile_context>
chip_gen: v7x
topology: tpu7x:2x2x1
jax: 0.10.0
libtpu: 0.0.40
codegen_flags: <defaults>
</compile_context>

<pallas_src>
import functools
import math

import jax
import jax.numpy as jnp
from jax import lax
from jax.experimental import pallas as pl
from jax.experimental.pallas import tpu as pltpu


NEG_BIG = -1e30  # finite "-inf": every row always has >=1 valid entry
                 # (num_agents >= 2 and the same-batch block is never empty),
                 # so a uniform fallback distribution can never occur.


# ----------------------------------------------------------------------------
# Single fused kernel: encoders -> opp attention -> K message rounds -> output
# ----------------------------------------------------------------------------
def _mpnn_fused_kernel(
    inp_ref, opp_ref,
    enc_w_ref, oenc_w_ref,
    oa_wk_ref, oa_wq_ref, oa_wvo_ref,
    msg_wbig_ref, biases_ref,
    o_ref,
    *, n_rounds, bsz):
    f32 = jnp.float32
    bf16 = jnp.bfloat16

    hh = enc_w_ref.shape[1]        # h_dim / 2
    hd = msg_wbig_ref.shape[0]     # h_dim
    na = inp_ref.shape[0]          # num_agents * bsz
    no = opp_ref.shape[0]          # num_opp_agents * bsz

    # ---- additive masks, generated in-kernel (no O(N^2) HBM inputs) --------
    # rows are agent-major (row = agent*bsz + batch)  =>  batch = row % bsz
    def _same_batch(r, c):
        if (bsz & (bsz - 1)) == 0:                       # power of two: use AND
            return (r & (bsz - 1)) == (c & (bsz - 1))
        return (r % bsz) == (c % bsz)

    r_o = lax.broadcasted_iota(jnp.int32, (na, no), 0)
    c_o = lax.broadcasted_iota(jnp.int32, (na, no), 1)
    opp_bias = jnp.where(_same_batch(r_o, c_o), 0.0, NEG_BIG).astype(f32)

    r_m = lax.broadcasted_iota(jnp.int32, (na, na), 0)
    c_m = lax.broadcasted_iota(jnp.int32, (na, na), 1)
    msg_bias = jnp.where(_same_batch(r_m, c_m) & (r_m != c_m),
                         0.0, NEG_BIG).astype(f32)

    # ---- packed biases (f32): row0=[enc_b|0], row1=[oenc_b|0], row2=upd_b ---
    enc_b = biases_ref[0:1, :hh]
    oenc_b = biases_ref[1:2, :hh]
    bu = jnp.broadcast_to(biases_ref[2:3, :], (na, hd))   # hoisted broadcast

    # ---- 1) encoders: Linear + ReLU (rows stay agent-major) ----------------
    h_left = jnp.maximum(
        jnp.dot(inp_ref[...].astype(bf16), enc_w_ref[...],
                preferred_element_type=f32) + enc_b, 0.0)            # (NA, hh)
    h_opp = jnp.maximum(
        jnp.dot(opp_ref[...].astype(bf16), oenc_w_ref[...],
                preferred_element_type=f32) + oenc_b, 0.0)           # (NO, hh)
    hl_b = h_left.astype(bf16)
    ho_b = h_opp.astype(bf16)

    # ---- 2) MultiHeadOppAttention (n_heads=1), flattened to 2-D ------------
    # norm folded into oa_wk; W_out folded into oa_wvo.
    k_o = jnp.dot(hl_b, oa_wk_ref[...], preferred_element_type=f32).astype(bf16)
    q_o = jnp.dot(ho_b, oa_wq_ref[...], preferred_element_type=f32).astype(bf16)
    v_o = jnp.dot(ho_b, oa_wvo_ref[...], preferred_element_type=f32).astype(bf16)
    compat = lax.dot_general(k_o, q_o, (((1,), (1,)), ((), ())),
                             preferred_element_type=f32) + opp_bias  # (NA, NO)
    mx = jnp.max(compat, axis=-1, keepdims=True)
    ex = jnp.exp(compat - mx)
    attn = ex * pl.reciprocal(jnp.sum(ex, axis=-1, keepdims=True), approx=True)
    e_opp = jnp.dot(attn.astype(bf16), v_o,
                    preferred_element_type=f32).astype(bf16)         # (NA, hh)

    # ---- 3) K rounds: self-attention (block-diag, no self) + update --------
    # msg_wbig = [Wq*norm | Wk | Wv@Wo@Wu_m | Wu_h]  (hd, 4hd), bf16
    wb = msg_wbig_ref[...]
    # round-1 projection without materializing concat([h_left, e_opp]):
    proj = (jnp.dot(hl_b, wb[:hh, :], preferred_element_type=f32)
            + jnp.dot(e_opp, wb[hh:, :], preferred_element_type=f32))  # (NA,4hd)
    h = None
    for r in range(n_rounds):
        q = proj[:, 0 * hd:1 * hd]        # already scaled by 1/sqrt(hd)
        k = proj[:, 1 * hd:2 * hd]
        v = proj[:, 2 * hd:3 * hd]        # already post (Wo @ Wu_m)
        hu = proj[:, 3 * hd:4 * hd]       # h @ Wu_h
        compat = lax.dot_general(q.astype(bf16), k.astype(bf16),
                                 (((1,), (1,)), ((), ())),
                                 preferred_element_type=f32) + msg_bias
        mx = jnp.max(compat, axis=-1, keepdims=True)
        ex = jnp.exp(compat - mx)
        attn = ex * pl.reciprocal(jnp.sum(ex, axis=-1, keepdims=True),
                                  approx=True)
        heads = jnp.dot(attn.astype(bf16), v.astype(bf16),
                        preferred_element_type=f32)                  # (NA, hd)
        h = jnp.maximum(hu + heads + bu, 0.0)
        if r + 1 < n_rounds:
            proj = jnp.dot(h.astype(bf16), wb, preferred_element_type=f32)

    # ---- 4) single lane-dense store, already in PyTorch's final layout ------
    o_ref[...] = h


# ----------------------------------------------------------------------------
# One-time parameter re-packing / prefusion (outside the hot path).
# ----------------------------------------------------------------------------
def prepare_params(params):
    h_dim = params['msg_wq'].shape[0]
    hh = h_dim // 2
    bf16 = jnp.bfloat16
    norm_m = 1.0 / math.sqrt(h_dim)
    norm_o = 1.0 / math.sqrt(hh)

    wu_h = params['upd_w'][:h_dim, :]     # update rows multiplying h
    wu_m = params['upd_w'][h_dim:, :]     # update rows multiplying the message

    # messages: fold the out-projection and the update's message rows into Wv,
    # and the 1/sqrt(key_dim) scale into Wq (exact re-associations in f32).
    msg_wv_fused = params['msg_wv'] @ params['msg_wo'] @ wu_m
    msg_wbig = jnp.concatenate(
        [params['msg_wq'] * norm_m, params['msg_wk'], msg_wv_fused, wu_h],
        axis=1)                                           # (h_dim, 4*h_dim)

    biases = jnp.zeros((3, h_dim), jnp.float32)
    biases = biases.at[0, :hh].set(params['enc_b'])
    biases = biases.at[1, :hh].set(params['opp_enc_b'])
    biases = biases.at[2, :].set(params['upd_b'])

    return {
        'enc_w': params['enc_w'].astype(bf16),
        'oenc_w': params['opp_enc_w'].astype(bf16),
        'oa_wk': (params['oa_wk'] * norm_o).astype(bf16),
        'oa_wq': params['oa_wq'].astype(bf16),
        'oa_wvo': (params['oa_wv'] @ params['oa_wo']).astype(bf16),
        'msg_wbig': msg_wbig.astype(bf16),
        'biases': biases,
    }


def mpnn_fwd(prep, inp, opp_inp, bsz, k_rounds=3):
    assert k_rounds >= 1
    na = inp.shape[0]
    hd = prep['msg_wbig'].shape[0]
    args = (inp, opp_inp,
            prep['enc_w'], prep['oenc_w'],
            prep['oa_wk'], prep['oa_wq'], prep['oa_wvo'],
            prep['msg_wbig'], prep['biases'])
    full = lambda a: pl.BlockSpec(a.shape, lambda i: (0, 0))
    return pl.pallas_call(
        functools.partial(_mpnn_fused_kernel, n_rounds=k_rounds, bsz=bsz),
        grid=(1,),
        in_specs=[full(a) for a in args],
        out_specs=pl.BlockSpec((na, hd), lambda i: (0, 0)),
        out_shape=jax.ShapeDtypeStruct((na, hd), jnp.float32),
        compiler_params=pltpu.CompilerParams(
            dimension_semantics=("arbitrary",)),
    )(*args)


# ----------------------------------------------------------------------------
# Pure-JAX reference (mirrors the PyTorch math, f32) for correctness checking.
# ----------------------------------------------------------------------------
def mpnn_fwd_ref(params, inp, opp_inp, num_agents, num_opp_agents, k_rounds=3):
    h_dim = params['msg_wq'].shape[0]
    hh = h_dim // 2
    bsz = inp.shape[0] // num_agents

    h = jnp.maximum(inp @ params['enc_w'] + params['enc_b'], 0.0)
    hopp = jnp.maximum(opp_inp @ params['opp_enc_w'] + params['opp_enc_b'], 0.0)
    h = jnp.transpose(h.reshape(num_agents, bsz, hh), (1, 0, 2))
    hopp = jnp.transpose(hopp.reshape(num_opp_agents, bsz, hh), (1, 0, 2))

    norm = 1.0 / math.sqrt(params['oa_wq'].shape[1])
    q = jnp.einsum('bod,de->boe', hopp, params['oa_wq'])
    k = jnp.einsum('bad,de->bae', h, params['oa_wk'])
    v = jnp.einsum('bod,de->boe', hopp, params['oa_wv'])
    attn = jax.nn.softmax(norm * jnp.einsum('bae,boe->bao', k, q), axis=-1)
    e_opp = jnp.einsum('bao,bod->bad', attn, v) @ params['oa_wo']

    h = jnp.concatenate([h, e_opp], axis=-1)
    a = h.shape[1]
    diag = jnp.eye(a, dtype=bool)[None, :, :]
    normm = 1.0 / math.sqrt(h_dim)
    for _ in range(k_rounds):
        q = jnp.einsum('bad,de->bae', h, params['msg_wq'])
        k = jnp.einsum('bad,de->bae', h, params['msg_wk'])
        v = jnp.einsum('bad,de->bae', h, params['msg_wv'])
        compat = normm * jnp.einsum('bqe,bke->bqk', q, k)
        compat = jnp.where(diag, -jnp.inf, compat)
        attn = jax.nn.softmax(compat, axis=-1)
        msg = jnp.einsum('bqk,bkd->bqd', attn, v) @ params['msg_wo']
        h = jnp.maximum(jnp.concatenate([h, msg], axis=-1) @ params['upd_w']
                        + params['upd_b'], 0.0)
    return jnp.transpose(h, (1, 0, 2)).reshape(num_agents * bsz, h_dim)


def init_params(key, input_size, h_dim):
    # Deterministic synthetic init (scaled normal); PyTorch biases init to 0.
    hh = h_dim // 2
    keys = jax.random.split(key, 12)

    def w(k, shape):
        return (jax.random.normal(k, shape, jnp.float32)
                / jnp.sqrt(jnp.float32(shape[0])))

    return {
        'enc_w': w(keys[0], (input_size, hh)),
        'enc_b': jnp.zeros((hh,), jnp.float32),
        'opp_enc_w': w(keys[1], (input_size, hh)),
        'opp_enc_b': jnp.zeros((hh,), jnp.float32),
        # MultiHeadOppAttention, n_heads=1: key=val=embed/2//1 = hh
        'oa_wq': w(keys[2], (hh, hh)),
        'oa_wk': w(keys[3], (hh, hh)),
        'oa_wv': w(keys[4], (hh, hh)),
        'oa_wo': w(keys[5], (hh, hh)),
        # MultiHeadAttention "messages", n_heads=1: key=val=embed = h_dim
        'msg_wq': w(keys[6], (h_dim, h_dim)),
        'msg_wk': w(keys[7], (h_dim, h_dim)),
        'msg_wv': w(keys[8], (h_dim, h_dim)),
        'msg_wo': w(keys[9], (h_dim, h_dim)),
        # update: Linear(h_dim + embed_dim, h_dim), stored (in, out), rows = [h, msg]
        'upd_w': w(keys[10], (2 * h_dim, h_dim)),
        'upd_b': jnp.zeros((h_dim,), jnp.float32),
    }


if __name__ == "__main__":
    NUM_AGENTS = 4
    NUM_OPP_AGENTS = 4
    BSZ = 2
    INPUT_SIZE = 16
    H_DIM = 128
    K_ROUNDS = 3

    key = jax.random.PRNGKey(0)
    k_inp, k_opp, k_par = jax.random.split(key, 3)

    inp = jax.random.normal(k_inp, (NUM_AGENTS * BSZ, INPUT_SIZE), jnp.float32)
    opp_inp = jax.random.normal(k_opp, (NUM_OPP_AGENTS * BSZ, INPUT_SIZE),
                                jnp.float32)
    params = init_params(k_par, INPUT_SIZE, H_DIM)

    # One-time weight re-packing; the hot path is a single pallas_call.
    prep = prepare_params(params)
    fwd = jax.jit(functools.partial(mpnn_fwd, bsz=BSZ, k_rounds=K_ROUNDS))

    out = jax.block_until_ready(fwd(prep, inp, opp_inp))
    ref = jax.block_until_ready(
        mpnn_fwd_ref(params, inp, opp_inp, NUM_AGENTS, NUM_OPP_AGENTS, K_ROUNDS))

    assert out.shape == (NUM_AGENTS * BSZ, H_DIM), out.shape
    assert bool(jnp.all(jnp.isfinite(out)))
    max_err = float(jnp.max(jnp.abs(out - ref)))
    # Tolerance is dominated by bf16 MXU operands compounding through the opp
    # attention + 3 message rounds (typical max |err| ~1e-2 here), plus the
    # weight prefusions (re-association) and the approx (EUP) reciprocal in
    # softmax.  Exact f32 parity would require dropping the bf16 cast.
    assert bool(jnp.allclose(out, ref, rtol=1e-1, atol=1e-1)), max_err

    # TODO(synk): value_head / policy_head / Categorical dist (act/evaluate)
    # are not part of MPNN._fwd and Categorical is undefined in the source;
    # only the _fwd hot path is implemented here.
    print("KERNEL_OK")
</pallas_src>

<mosaic_0001>
module attributes {stable_mosaic.version = 11 : i64} {
  func.func @_mpnn_fused_kernel(%arg0: i32, %arg1: memref<8x16xf32, #tpu.memory_space<vmem>>, %arg2: memref<8x16xf32, #tpu.memory_space<vmem>>, %arg3: memref<16x64xbf16, #tpu.memory_space<vmem>>, %arg4: memref<16x64xbf16, #tpu.memory_space<vmem>>, %arg5: memref<64x64xbf16, #tpu.memory_space<vmem>>, %arg6: memref<64x64xbf16, #tpu.memory_space<vmem>>, %arg7: memref<64x64xbf16, #tpu.memory_space<vmem>>, %arg8: memref<128x512xbf16, #tpu.memory_space<vmem>>, %arg9: memref<3x128xf32, #tpu.memory_space<vmem>>, %arg10: memref<8x128xf32, #tpu.memory_space<vmem>>) attributes {dimension_semantics = [#tpu.dimension_semantics<arbitrary>], iteration_bounds = array<i64: 1>, scalar_prefetch = 0 : i64, scratch_operands = 0 : i64, tpu.core_type = #tpu.core_type<tc>, window_params = [{pipeline_mode = #tpu.pipeline_mode<synchronous>, transform_indices = @transform_0, window_bounds = array<i64: 8, 16>}, {pipeline_mode = #tpu.pipeline_mode<synchronous>, transform_indices = @transform_1, window_bounds = array<i64: 8, 16>}, {pipeline_mode = #tpu.pipeline_mode<synchronous>, transform_indices = @transform_2, window_bounds = array<i64: 16, 64>}, {pipeline_mode = #tpu.pipeline_mode<synchronous>, transform_indices = @transform_3, window_bounds = array<i64: 16, 64>}, {pipeline_mode = #tpu.pipeline_mode<synchronous>, transform_indices = @transform_4, window_bounds = array<i64: 64, 64>}, {pipeline_mode = #tpu.pipeline_mode<synchronous>, transform_indices = @transform_5, window_bounds = array<i64: 64, 64>}, {pipeline_mode = #tpu.pipeline_mode<synchronous>, transform_indices = @transform_6, window_bounds = array<i64: 64, 64>}, {pipeline_mode = #tpu.pipeline_mode<synchronous>, transform_indices = @transform_7, window_bounds = array<i64: 128, 512>}, {pipeline_mode = #tpu.pipeline_mode<synchronous>, transform_indices = @transform_8, window_bounds = array<i64: 3, 128>}, {pipeline_mode = #tpu.pipeline_mode<synchronous>, transform_indices = @transform_9, window_bounds = array<i64: 8, 128>}]} {
    %0 = tpu.iota {dimensions = array<i32: 0>} : vector<8x8xi32>
    %1 = tpu.iota {dimensions = array<i32: 1>} : vector<8x8xi32>
    %c1_i32 = arith.constant 1 : i32
    %2 = vector.broadcast %c1_i32 : i32 to vector<8x8xi32>
    %3 = arith.andi %0, %2 : vector<8x8xi32>
    %c1_i32_0 = arith.constant 1 : i32
    %4 = vector.broadcast %c1_i32_0 : i32 to vector<8x8xi32>
    %5 = arith.andi %1, %4 : vector<8x8xi32>
    %6 = arith.cmpi eq, %3, %5 : vector<8x8xi32>
    %cst = arith.constant 0.000000e+00 : f32
    %cst_1 = arith.constant -1.000000e+30 : f32
    %7 = vector.broadcast %cst : f32 to vector<8x8xf32>
    %8 = vector.broadcast %cst_1 : f32 to vector<8x8xf32>
    %9 = arith.select %6, %7, %8 : vector<8x8xi1>, vector<8x8xf32>
    %10 = tpu.iota {dimensions = array<i32: 0>} : vector<8x8xi32>
    %11 = tpu.iota {dimensions = array<i32: 1>} : vector<8x8xi32>
    %c1_i32_2 = arith.constant 1 : i32
    %12 = vector.broadcast %c1_i32_2 : i32 to vector<8x8xi32>
    %13 = arith.andi %10, %12 : vector<8x8xi32>
    %c1_i32_3 = arith.constant 1 : i32
    %14 = vector.broadcast %c1_i32_3 : i32 to vector<8x8xi32>
    %15 = arith.andi %11, %14 : vector<8x8xi32>
    %16 = arith.cmpi eq, %13, %15 : vector<8x8xi32>
    %17 = arith.cmpi ne, %10, %11 : vector<8x8xi32>
    %18 = arith.andi %16, %17 : vector<8x8xi1>
    %cst_4 = arith.constant 0.000000e+00 : f32
    %cst_5 = arith.constant -1.000000e+30 : f32
    %19 = vector.broadcast %cst_4 : f32 to vector<8x8xf32>
    %20 = vector.broadcast %cst_5 : f32 to vector<8x8xf32>
    %21 = arith.select %18, %19, %20 : vector<8x8xi1>, vector<8x8xf32>
    %c0 = arith.constant 0 : index
    %c0_6 = arith.constant 0 : index
    %22 = vector.load %arg9[%c0, %c0_6] : memref<3x128xf32, #tpu.memory_space<vmem>>, vector<1x64xf32>
    %c1 = arith.constant 1 : index
    %c0_7 = arith.constant 0 : index
    %23 = vector.load %arg9[%c1, %c0_7] : memref<3x128xf32, #tpu.memory_space<vmem>>, vector<1x64xf32>
    %c2 = arith.constant 2 : index
    %c0_8 = arith.constant 0 : index
    %24 = vector.load %arg9[%c2, %c0_8] : memref<3x128xf32, #tpu.memory_space<vmem>>, vector<1x128xf32>
    %25 = vector.shape_cast %24 : vector<1x128xf32> to vector<1x128xf32>
    %26 = vector.broadcast %25 : vector<1x128xf32> to vector<8x128xf32>
    %c0_9 = arith.constant 0 : index
    %c0_10 = arith.constant 0 : index
    %27 = vector.load %arg1[%c0_9, %c0_10] : memref<8x16xf32, #tpu.memory_space<vmem>>, vector<8x16xf32>
    %28 = arith.truncf %27 : vector<8x16xf32> to vector<8x16xbf16>
    %c0_11 = arith.constant 0 : index
    %c0_12 = arith.constant 0 : index
    %29 = vector.load %arg3[%c0_11, %c0_12] : memref<16x64xbf16, #tpu.memory_space<vmem>>, vector<16x64xbf16>
    %cst_13 = arith.constant dense<0.000000e+00> : vector<8x64xf32>
    %30 = tpu.matmul %28, %29, %cst_13 {dimension_numbers = #tpu.dot_dimension_numbers<[1], [0], [0], [1], [0, 0, 1, 1], [], []>} : vector<8x16xbf16>, vector<16x64xbf16>, vector<8x64xf32> -> vector<8x64xf32>
    %31 = vector.broadcast %22 : vector<1x64xf32> to vector<8x64xf32>
    %32 = arith.addf %30, %31 : vector<8x64xf32>
    %cst_14 = arith.constant 0.000000e+00 : f32
    %33 = vector.broadcast %cst_14 : f32 to vector<8x64xf32>
    %34 = arith.maximumf %32, %33 : vector<8x64xf32>
    %c0_15 = arith.constant 0 : index
    %c0_16 = arith.constant 0 : index
    %35 = vector.load %arg2[%c0_15, %c0_16] : memref<8x16xf32, #tpu.memory_space<vmem>>, vector<8x16xf32>
    %36 = arith.truncf %35 : vector<8x16xf32> to vector<8x16xbf16>
    %c0_17 = arith.constant 0 : index
    %c0_18 = arith.constant 0 : index
    %37 = vector.load %arg4[%c0_17, %c0_18] : memref<16x64xbf16, #tpu.memory_space<vmem>>, vector<16x64xbf16>
    %cst_19 = arith.constant dense<0.000000e+00> : vector<8x64xf32>
    %38 = tpu.matmul %36, %37, %cst_19 {dimension_numbers = #tpu.dot_dimension_numbers<[1], [0], [0], [1], [0, 0, 1, 1], [], []>} : vector<8x16xbf16>, vector<16x64xbf16>, vector<8x64xf32> -> vector<8x64xf32>
    %39 = vector.broadcast %23 : vector<1x64xf32> to vector<8x64xf32>
    %40 = arith.addf %38, %39 : vector<8x64xf32>
    %cst_20 = arith.constant 0.000000e+00 : f32
    %41 = vector.broadcast %cst_20 : f32 to vector<8x64xf32>
    %42 = arith.maximumf %40, %41 : vector<8x64xf32>
    %43 = arith.truncf %34 : vector<8x64xf32> to vector<8x64xbf16>
    %44 = arith.truncf %42 : vector<8x64xf32> to vector<8x64xbf16>
    %c0_21 = arith.constant 0 : index
    %c0_22 = arith.constant 0 : index
    %45 = vector.load %arg5[%c0_21, %c0_22] : memref<64x64xbf16, #tpu.memory_space<vmem>>, vector<64x64xbf16>
    %cst_23 = arith.constant dense<0.000000e+00> : vector<8x64xf32>
    %46 = tpu.matmul %43, %45, %cst_23 {dimension_numbers = #tpu.dot_dimension_numbers<[1], [0], [0], [1], [0, 0, 1, 1], [], []>} : vector<8x64xbf16>, vector<64x64xbf16>, vector<8x64xf32> -> vector<8x64xf32>
    %47 = arith.truncf %46 : vector<8x64xf32> to vector<8x64xbf16>
    %c0_24 = arith.constant 0 : index
    %c0_25 = arith.constant 0 : index
    %48 = vector.load %arg6[%c0_24, %c0_25] : memref<64x64xbf16, #tpu.memory_space<vmem>>, vector<64x64xbf16>
    %cst_26 = arith.constant dense<0.000000e+00> : vector<8x64xf32>
    %49 = tpu.matmul %44, %48, %cst_26 {dimension_numbers = #tpu.dot_dimension_numbers<[1], [0], [0], [1], [0, 0, 1, 1], [], []>} : vector<8x64xbf16>, vector<64x64xbf16>, vector<8x64xf32> -> vector<8x64xf32>
    %50 = arith.truncf %49 : vector<8x64xf32> to vector<8x64xbf16>
    %c0_27 = arith.constant 0 : index
    %c0_28 = arith.constant 0 : index
    %51 = vector.load %arg7[%c0_27, %c0_28] : memref<64x64xbf16, #tpu.memory_space<vmem>>, vector<64x64xbf16>
    %cst_29 = arith.constant dense<0.000000e+00> : vector<8x64xf32>
    %52 = tpu.matmul %44, %51, %cst_29 {dimension_numbers = #tpu.dot_dimension_numbers<[1], [0], [0], [1], [0, 0, 1, 1], [], []>} : vector<8x64xbf16>, vector<64x64xbf16>, vector<8x64xf32> -> vector<8x64xf32>
    %53 = arith.truncf %52 : vector<8x64xf32> to vector<8x64xbf16>
    %cst_30 = arith.constant dense<0.000000e+00> : vector<8x8xf32>
    %54 = tpu.matmul %47, %50, %cst_30 {dimension_numbers = #tpu.dot_dimension_numbers<[1], [1], [0], [0], [0, 0, 1, 0], [], []>} : vector<8x64xbf16>, vector<8x64xbf16>, vector<8x8xf32> -> vector<8x8xf32>
    %55 = arith.addf %54, %9 : vector<8x8xf32>
    %cst_31 = arith.constant dense<0xFF800000> : vector<8xf32>
    %56 = vector.multi_reduction <maximumf>, %55, %cst_31 [1] : vector<8x8xf32> to vector<8xf32>
    %57 = vector.shape_cast %56 : vector<8xf32> to vector<8x1xf32>
    %58 = vector.broadcast %57 : vector<8x1xf32> to vector<8x8xf32>
    %59 = arith.subf %55, %58 : vector<8x8xf32>
    %60 = math.exp %59 : vector<8x8xf32>
    %cst_32 = arith.constant dense<0.000000e+00> : vector<8xf32>
    %61 = vector.multi_reduction <add>, %60, %cst_32 [1] : vector<8x8xf32> to vector<8xf32>
    %62 = vector.shape_cast %61 : vector<8xf32> to vector<8x1xf32>
    %63 = tpu.reciprocal %62 {approx = true} : vector<8x1xf32> -> vector<8x1xf32>
    %64 = vector.broadcast %63 : vector<8x1xf32> to vector<8x8xf32>
    %65 = arith.mulf %60, %64 : vector<8x8xf32>
    %66 = arith.truncf %65 : vector<8x8xf32> to vector<8x8xbf16>
    %cst_33 = arith.constant dense<0.000000e+00> : vector<8x64xf32>
    %67 = tpu.matmul %66, %53, %cst_33 {dimension_numbers = #tpu.dot_dimension_numbers<[1], [0], [0], [1], [0, 0, 1, 1], [], []>} : vector<8x8xbf16>, vector<8x64xbf16>, vector<8x64xf32> -> vector<8x64xf32>
    %68 = arith.truncf %67 : vector<8x64xf32> to vector<8x64xbf16>
    %c0_34 = arith.constant 0 : index
    %c0_35 = arith.constant 0 : index
    %69 = vector.load %arg8[%c0_34, %c0_35] : memref<128x512xbf16, #tpu.memory_space<vmem>>, vector<128x512xbf16>
    %70 = vector.extract_strided_slice %69 {offsets = [0, 0], sizes = [64, 512], strides = [1, 1]} : vector<128x512xbf16> to vector<64x512xbf16>
    %cst_36 = arith.constant dense<0.000000e+00> : vector<8x512xf32>
    %71 = tpu.matmul %43, %70, %cst_36 {dimension_numbers = #tpu.dot_dimension_numbers<[1], [0], [0], [1], [0, 0, 1, 1], [], []>} : vector<8x64xbf16>, vector<64x512xbf16>, vector<8x512xf32> -> vector<8x512xf32>
    %72 = vector.extract_strided_slice %69 {offsets = [64, 0], sizes = [64, 512], strides = [1, 1]} : vector<128x512xbf16> to vector<64x512xbf16>
    %cst_37 = arith.constant dense<0.000000e+00> : vector<8x512xf32>
    %73 = tpu.matmul %68, %72, %cst_37 {dimension_numbers = #tpu.dot_dimension_numbers<[1], [0], [0], [1], [0, 0, 1, 1], [], []>} : vector<8x64xbf16>, vector<64x512xbf16>, vector<8x512xf32> -> vector<8x512xf32>
    %74 = arith.addf %71, %73 : vector<8x512xf32>
    %75 = vector.extract_strided_slice %74 {offsets = [0, 0], sizes = [8, 128], strides = [1, 1]} : vector<8x512xf32> to vector<8x128xf32>
    %76 = vector.extract_strided_slice %74 {offsets = [0, 128], sizes = [8, 128], strides = [1, 1]} : vector<8x512xf32> to vector<8x128xf32>
    %77 = vector.extract_strided_slice %74 {offsets = [0, 256], sizes = [8, 128], strides = [1, 1]} : vector<8x512xf32> to vector<8x128xf32>
    %78 = vector.extract_strided_slice %74 {offsets = [0, 384], sizes = [8, 128], strides = [1, 1]} : vector<8x512xf32> to vector<8x128xf32>
    %79 = arith.truncf %75 : vector<8x128xf32> to vector<8x128xbf16>
    %80 = arith.truncf %76 : vector<8x128xf32> to vector<8x128xbf16>
    %cst_38 = arith.constant dense<0.000000e+00> : vector<8x8xf32>
    %81 = tpu.matmul %79, %80, %cst_38 {dimension_numbers = #tpu.dot_dimension_numbers<[1], [1], [0], [0], [0, 0, 1, 0], [], []>} : vector<8x128xbf16>, vector<8x128xbf16>, vector<8x8xf32> -> vector<8x8xf32>
    %82 = arith.addf %81, %21 : vector<8x8xf32>
    %cst_39 = arith.constant dense<0xFF800000> : vector<8xf32>
    %83 = vector.multi_reduction <maximumf>, %82, %cst_39 [1] : vector<8x8xf32> to vector<8xf32>
    %84 = vector.shape_cast %83 : vector<8xf32> to vector<8x1xf32>
    %85 = vector.broadcast %84 : vector<8x1xf32> to vector<8x8xf32>
    %86 = arith.subf %82, %85 : vector<8x8xf32>
    %87 = math.exp %86 : vector<8x8xf32>
    %cst_40 = arith.constant dense<0.000000e+00> : vector<8xf32>
    %88 = vector.multi_reduction <add>, %87, %cst_40 [1] : vector<8x8xf32> to vector<8xf32>
    %89 = vector.shape_cast %88 : vector<8xf32> to vector<8x1xf32>
    %90 = tpu.reciprocal %89 {approx = true} : vector<8x1xf32> -> vector<8x1xf32>
    %91 = vector.broadcast %90 : vector<8x1xf32> to vector<8x8xf32>
    %92 = arith.mulf %87, %91 : vector<8x8xf32>
    %93 = arith.truncf %92 : vector<8x8xf32> to vector<8x8xbf16>
    %94 = arith.truncf %77 : vector<8x128xf32> to vector<8x128xbf16>
    %cst_41 = arith.constant dense<0.000000e+00> : vector<8x128xf32>
    %95 = tpu.matmul %93, %94, %cst_41 {dimension_numbers = #tpu.dot_dimension_numbers<[1], [0], [0], [1], [0, 0, 1, 1], [], []>} : vector<8x8xbf16>, vector<8x128xbf16>, vector<8x128xf32> -> vector<8x128xf32>
    %96 = arith.addf %78, %95 : vector<8x128xf32>
    %97 = arith.addf %96, %26 : vector<8x128xf32>
    %cst_42 = arith.constant 0.000000e+00 : f32
    %98 = vector.broadcast %cst_42 : f32 to vector<8x128xf32>
    %99 = arith.maximumf %97, %98 : vector<8x128xf32>
    %100 = arith.truncf %99 : vector<8x128xf32> to vector<8x128xbf16>
    %cst_43 = arith.constant dense<0.000000e+00> : vector<8x512xf32>
    %101 = tpu.matmul %100, %69, %cst_43 {dimension_numbers = #tpu.dot_dimension_numbers<[1], [0], [0], [1], [0, 0, 1, 1], [], []>} : vector<8x128xbf16>, vector<128x512xbf16>, vector<8x512xf32> -> vector<8x512xf32>
    %102 = vector.extract_strided_slice %101 {offsets = [0, 0], sizes = [8, 128], strides = [1, 1]} : vector<8x512xf32> to vector<8x128xf32>
    %103 = vector.extract_strided_slice %101 {offsets = [0, 128], sizes = [8, 128], strides = [1, 1]} : vector<8x512xf32> to vector<8x128xf32>
    %104 = vector.extract_strided_slice %101 {offsets = [0, 256], sizes = [8, 128], strides = [1, 1]} : vector<8x512xf32> to vector<8x128xf32>
    %105 = vector.extract_strided_slice %101 {offsets = [0, 384], sizes = [8, 128], strides = [1, 1]} : vector<8x512xf32> to vector<8x128xf32>
    %106 = arith.truncf %102 : vector<8x128xf32> to vector<8x128xbf16>
    %107 = arith.truncf %103 : vector<8x128xf32> to vector<8x128xbf16>
    %cst_44 = arith.constant dense<0.000000e+00> : vector<8x8xf32>
    %108 = tpu.matmul %106, %107, %cst_44 {dimension_numbers = #tpu.dot_dimension_numbers<[1], [1], [0], [0], [0, 0, 1, 0], [], []>} : vector<8x128xbf16>, vector<8x128xbf16>, vector<8x8xf32> -> vector<8x8xf32>
    %109 = arith.addf %108, %21 : vector<8x8xf32>
    %cst_45 = arith.constant dense<0xFF800000> : vector<8xf32>
    %110 = vector.multi_reduction <maximumf>, %109, %cst_45 [1] : vector<8x8xf32> to vector<8xf32>
    %111 = vector.shape_cast %110 : vector<8xf32> to vector<8x1xf32>
    %112 = vector.broadcast %111 : vector<8x1xf32> to vector<8x8xf32>
    %113 = arith.subf %109, %112 : vector<8x8xf32>
    %114 = math.exp %113 : vector<8x8xf32>
    %cst_46 = arith.constant dense<0.000000e+00> : vector<8xf32>
    %115 = vector.multi_reduction <add>, %114, %cst_46 [1] : vector<8x8xf32> to vector<8xf32>
    %116 = vector.shape_cast %115 : vector<8xf32> to vector<8x1xf32>
    %117 = tpu.reciprocal %116 {approx = true} : vector<8x1xf32> -> vector<8x1xf32>
    %118 = vector.broadcast %117 : vector<8x1xf32> to vector<8x8xf32>
    %119 = arith.mulf %114, %118 : vector<8x8xf32>
    %120 = arith.truncf %119 : vector<8x8xf32> to vector<8x8xbf16>
    %121 = arith.truncf %104 : vector<8x128xf32> to vector<8x128xbf16>
    %cst_47 = arith.constant dense<0.000000e+00> : vector<8x128xf32>
    %122 = tpu.matmul %120, %121, %cst_47 {dimension_numbers = #tpu.dot_dimension_numbers<[1], [0], [0], [1], [0, 0, 1, 1], [], []>} : vector<8x8xbf16>, vector<8x128xbf16>, vector<8x128xf32> -> vector<8x128xf32>
    %123 = arith.addf %105, %122 : vector<8x128xf32>
    %124 = arith.addf %123, %26 : vector<8x128xf32>
    %cst_48 = arith.constant 0.000000e+00 : f32
    %125 = vector.broadcast %cst_48 : f32 to vector<8x128xf32>
    %126 = arith.maximumf %124, %125 : vector<8x128xf32>
    %127 = arith.truncf %126 : vector<8x128xf32> to vector<8x128xbf16>
    %cst_49 = arith.constant dense<0.000000e+00> : vector<8x512xf32>
    %128 = tpu.matmul %127, %69, %cst_49 {dimension_numbers = #tpu.dot_dimension_numbers<[1], [0], [0], [1], [0, 0, 1, 1], [], []>} : vector<8x128xbf16>, vector<128x512xbf16>, vector<8x512xf32> -> vector<8x512xf32>
    %129 = vector.extract_strided_slice %128 {offsets = [0, 0], sizes = [8, 128], strides = [1, 1]} : vector<8x512xf32> to vector<8x128xf32>
    %130 = vector.extract_strided_slice %128 {offsets = [0, 128], sizes = [8, 128], strides = [1, 1]} : vector<8x512xf32> to vector<8x128xf32>
    %131 = vector.extract_strided_slice %128 {offsets = [0, 256], sizes = [8, 128], strides = [1, 1]} : vector<8x512xf32> to vector<8x128xf32>
    %132 = vector.extract_strided_slice %128 {offsets = [0, 384], sizes = [8, 128], strides = [1, 1]} : vector<8x512xf32> to vector<8x128xf32>
    %133 = arith.truncf %129 : vector<8x128xf32> to vector<8x128xbf16>
    %134 = arith.truncf %130 : vector<8x128xf32> to vector<8x128xbf16>
    %cst_50 = arith.constant dense<0.000000e+00> : vector<8x8xf32>
    %135 = tpu.matmul %133, %134, %cst_50 {dimension_numbers = #tpu.dot_dimension_numbers<[1], [1], [0], [0], [0, 0, 1, 0], [], []>} : vector<8x128xbf16>, vector<8x128xbf16>, vector<8x8xf32> -> vector<8x8xf32>
    %136 = arith.addf %135, %21 : vector<8x8xf32>
    %cst_51 = arith.constant dense<0xFF800000> : vector<8xf32>
    %137 = vector.multi_reduction <maximumf>, %136, %cst_51 [1] : vector<8x8xf32> to vector<8xf32>
    %138 = vector.shape_cast %137 : vector<8xf32> to vector<8x1xf32>
    %139 = vector.broadcast %138 : vector<8x1xf32> to vector<8x8xf32>
    %140 = arith.subf %136, %139 : vector<8x8xf32>
    %141 = math.exp %140 : vector<8x8xf32>
    %cst_52 = arith.constant dense<0.000000e+00> : vector<8xf32>
    %142 = vector.multi_reduction <add>, %141, %cst_52 [1] : vector<8x8xf32> to vector<8xf32>
    %143 = vector.shape_cast %142 : vector<8xf32> to vector<8x1xf32>
    %144 = tpu.reciprocal %143 {approx = true} : vector<8x1xf32> -> vector<8x1xf32>
    %145 = vector.broadcast %144 : vector<8x1xf32> to vector<8x8xf32>
    %146 = arith.mulf %141, %145 : vector<8x8xf32>
    %147 = arith.truncf %146 : vector<8x8xf32> to vector<8x8xbf16>
    %148 = arith.truncf %131 : vector<8x128xf32> to vector<8x128xbf16>
    %cst_53 = arith.constant dense<0.000000e+00> : vector<8x128xf32>
    %149 = tpu.matmul %147, %148, %cst_53 {dimension_numbers = #tpu.dot_dimension_numbers<[1], [0], [0], [1], [0, 0, 1, 1], [], []>} : vector<8x8xbf16>, vector<8x128xbf16>, vector<8x128xf32> -> vector<8x128xf32>
    %150 = arith.addf %132, %149 : vector<8x128xf32>
    %151 = arith.addf %150, %26 : vector<8x128xf32>
    %cst_54 = arith.constant 0.000000e+00 : f32
    %152 = vector.broadcast %cst_54 : f32 to vector<8x128xf32>
    %153 = arith.maximumf %151, %152 : vector<8x128xf32>
    %c0_55 = arith.constant 0 : index
    %c0_56 = arith.constant 0 : index
    %154 = vector.load %arg10[%c0_55, %c0_56] : memref<8x128xf32, #tpu.memory_space<vmem>>, vector<8x128xf32>
    tpu.vector_store %arg10[%c0_55, %c0_56], %153 {strides = array<i32>} : memref<8x128xf32, #tpu.memory_space<vmem>>, vector<8x128xf32>,
    return
  }
  func.func @transform_0(%arg0: i32) -> (i32, i32) {
    %c0_i32 = arith.constant 0 : i32
    %c0_i32_0 = arith.constant 0 : i32
    %c0_i32_1 = arith.constant 0 : i32
    return %c0_i32, %c0_i32_0 : i32, i32
  }
  func.func @transform_1(%arg0: i32) -> (i32, i32) {
    %c0_i32 = arith.constant 0 : i32
    %c0_i32_0 = arith.constant 0 : i32
    %c0_i32_1 = arith.constant 0 : i32
    return %c0_i32, %c0_i32_0 : i32, i32
  }
  func.func @transform_2(%arg0: i32) -> (i32, i32) {
    %c0_i32 = arith.constant 0 : i32
    %c0_i32_0 = arith.constant 0 : i32
    %c0_i32_1 = arith.constant 0 : i32
    return %c0_i32, %c0_i32_0 : i32, i32
  }
  func.func @transform_3(%arg0: i32) -> (i32, i32) {
    %c0_i32 = arith.constant 0 : i32
    %c0_i32_0 = arith.constant 0 : i32
    %c0_i32_1 = arith.constant 0 : i32
    return %c0_i32, %c0_i32_0 : i32, i32
  }
  func.func @transform_4(%arg0: i32) -> (i32, i32) {
    %c0_i32 = arith.constant 0 : i32
    %c0_i32_0 = arith.constant 0 : i32
    %c0_i32_1 = arith.constant 0 : i32
    return %c0_i32, %c0_i32_0 : i32, i32
  }
  func.func @transform_5(%arg0: i32) -> (i32, i32) {
    %c0_i32 = arith.constant 0 : i32
    %c0_i32_0 = arith.constant 0 : i32
    %c0_i32_1 = arith.constant 0 : i32
    return %c0_i32, %c0_i32_0 : i32, i32
  }
  func.func @transform_6(%arg0: i32) -> (i32, i32) {
    %c0_i32 = arith.constant 0 : i32
    %c0_i32_0 = arith.constant 0 : i32
    %c0_i32_1 = arith.constant 0 : i32
    return %c0_i32, %c0_i32_0 : i32, i32
  }
  func.func @transform_7(%arg0: i32) -> (i32, i32) {
    %c0_i32 = arith.constant 0 : i32
    %c0_i32_0 = arith.constant 0 : i32
    %c0_i32_1 = arith.constant 0 : i32
    return %c0_i32, %c0_i32_0 : i32, i32
  }
  func.func @transform_8(%arg0: i32) -> (i32, i32) {
    %c0_i32 = arith.constant 0 : i32
    %c0_i32_0 = arith.constant 0 : i32
    %c0_i32_1 = arith.constant 0 : i32
    return %c0_i32, %c0_i32_0 : i32, i32
  }
  func.func @transform_9(%arg0: i32) -> (i32, i32) {
    %c0_i32 = arith.constant 0 : i32
    %c0_i32_0 = arith.constant 0 : i32
    %c0_i32_1 = arith.constant 0 : i32
    return %c0_i32, %c0_i32_0 : i32, i32
  }
}

</mosaic_0001>

<llo_original>
// kernel: mpnn_fwd.1
$region0: #{mpnn_fwd.1}
  #allocation0 [shape = 'u32[]', space=smem, size = 0x4, offset = 0x4, fixed_abs, tag = 'smem constant byte address 0x4 - core index']
  #allocation1 [shape = 'u32[144,128]{1,0:T(1,128)}', space=vmem, size = 0x12000, scoped, tag = 'internal scratch']
  %s0 = inlined_call_operand.vmem [shape: f32[8,16], index: 0, kind: input, shape index: {}]
  %s1 = inlined_call_operand.vmem [shape: f32[8,16], index: 1, kind: input, shape index: {}]
  %s2 = inlined_call_operand.hbm [shape: bf16[16,64], index: 2, kind: input, shape index: {}]
  %s3 = inlined_call_operand.hbm [shape: bf16[16,64], index: 3, kind: input, shape index: {}]
  %s4 = inlined_call_operand.hbm [shape: bf16[64,64], index: 4, kind: input, shape index: {}]
  %s5 = inlined_call_operand.hbm [shape: bf16[64,64], index: 5, kind: input, shape index: {}]
  %s6 = inlined_call_operand.hbm [shape: bf16[64,64], index: 6, kind: input, shape index: {}]
  %s7 = inlined_call_operand.hbm [shape: bf16[128,512], index: 7, kind: input, shape index: {}]
  %s8 = inlined_call_operand.hbm [shape: f32[3,128], index: 8, kind: input, shape index: {}]
  %s9 = inlined_call_operand.hbm [shape: f32[8,128], index: 9, kind: output, shape index: {}]
  %s10 = sld [smem:[#allocation0]]
  $region74: #{mpnn_fwd.1} parent=0
    _
  %s12 = ssub.s32 1, %s10
  %s13 = scalar_select 0, %s12, %s10
  $region1: #{mpnn_fwd.1} parent=0
    #allocation2 [shape = 'u8[4096]{0}', space=vmem, size = 0x1000, scoped, tag = 'input window, operand 2, single buffered']
    #allocation3 [shape = 's32[1]{0}', space=sflag, size = 0x4, scoped, tag = 'scoped memory for mpnn_fwd.1']
    #allocation4 [shape = 's32[1]{0}', space=sflag, size = 0x4, scoped, tag = 'scoped memory for mpnn_fwd.1']
    #allocation5 [shape = 'u8[4096]{0}', space=vmem, size = 0x1000, scoped, tag = 'input window, operand 3, single buffered']
    #allocation6 [shape = 's32[1]{0}', space=sflag, size = 0x4, scoped, tag = 'scoped memory for mpnn_fwd.1']
    #allocation7 [shape = 'u8[16384]{0}', space=vmem, size = 0x4000, scoped, tag = 'input window, operand 4, single buffered']
    #allocation8 [shape = 'u8[16384]{0}', space=vmem, size = 0x4000, scoped, tag = 'input window, operand 5, single buffered']
    #allocation9 [shape = 's32[1]{0}', space=sflag, size = 0x4, scoped, tag = 'scoped memory for mpnn_fwd.1']
    #allocation10 [shape = 'u8[16384]{0}', space=vmem, size = 0x4000, scoped, tag = 'input window, operand 6, single buffered']
    #allocation11 [shape = 'u8[131072]{0}', space=vmem, size = 0x20000, scoped, tag = 'input window, operand 7, single buffered']
    #allocation12 [shape = 's32[1]{0}', space=sflag, size = 0x4, scoped, tag = 'scoped memory for mpnn_fwd.1']
    #allocation13 [shape = 'u8[2048]{0}', space=vmem, size = 0x800, scoped, tag = 'input window, operand 8, single buffered']
    #allocation14 [shape = 'u8[4096]{0}', space=vmem, size = 0x1000, scoped, tag = 'output window, operand 0, single buffered']
    %14 = vsyncpa [#allocation3], 0
    %15 = vsyncpa [#allocation6], 0
    %16 = vsyncpa [#allocation9], 0
    %17 = vsyncpa [#allocation12], 0
    %18 = vsyncpa [#allocation4], 0
    // Predicated region
    $region2: #{mpnn_fwd.1} parent=1 // pred_check
      _
    $region3: #{mpnn_fwd.1} parent=1 // pred_check_branch
      %20 = sbr.rel (0) target = $region5
    $region4: #{mpnn_fwd.1} parent=1 // pred_region
      _
    $region5: #{mpnn_fwd.1} parent=1 // pred_fallthru
      _
    // Predicated region
    $region6: #{mpnn_fwd.1} parent=1 // pred_check
      _
    $region7: #{mpnn_fwd.1} parent=1 // pred_check_branch
      %22 = sbr.rel (0) target = $region9
    $region8: #{mpnn_fwd.1} parent=1 // pred_region
      _
    $region9: #{mpnn_fwd.1} parent=1 // pred_fallthru
      _
    // Predicated region
    $region10: #{mpnn_fwd.1} parent=1 // pred_check
      _
    $region11: #{mpnn_fwd.1} parent=1 // pred_check_branch
      %24 = sbr.rel (0) target = $region13
    $region12: #{mpnn_fwd.1} parent=1 // pred_region
      %s26 = ssub.s32 128, 128
      %27 = vsyncadd [#allocation3], %s26
      %s28 = sshll.u32 [#allocation2], 4
      %s29 = int_to_ptr.vmem [resolvable:$true] %s28
      %34 = dma.hbm_to_vmem [thread:$0]  %s2, 128, %s29, [#allocation3], 64, 64, 4
    $region13: #{mpnn_fwd.1} parent=1 // pred_fallthru
      _
    // Predicated region
    $region14: #{mpnn_fwd.1} parent=1 // pred_check
      _
    $region15: #{mpnn_fwd.1} parent=1 // pred_check_branch
      %36 = sbr.rel (0) target = $region17
    $region16: #{mpnn_fwd.1} parent=1 // pred_region
      %s38 = ssub.s32 128, 128
      %39 = vsyncadd [#allocation6], %s38
      %s40 = sshll.u32 [#allocation5], 4
      %s41 = int_to_ptr.vmem [resolvable:$true] %s40
      %46 = dma.hbm_to_vmem [thread:$0]  %s3, 128, %s41, [#allocation6], 64, 64, 4
    $region17: #{mpnn_fwd.1} parent=1 // pred_fallthru
      _
    // Predicated region
    $region18: #{mpnn_fwd.1} parent=1 // pred_check
      _
    $region19: #{mpnn_fwd.1} parent=1 // pred_check_branch
      %48 = sbr.rel (0) target = $region21
    $region20: #{mpnn_fwd.1} parent=1 // pred_region
      %s50 = ssub.s32 512, 512
      %51 = vsyncadd [#allocation6], %s50
      %s52 = sshll.u32 [#allocation7], 4
      %s53 = int_to_ptr.vmem [resolvable:$true] %s52
      %58 = dma.hbm_to_vmem [thread:$0]  %s4, 512, %s53, [#allocation6], 64, 64, 4
    $region21: #{mpnn_fwd.1} parent=1 // pred_fallthru
      _
    // Predicated region
    $region22: #{mpnn_fwd.1} parent=1 // pred_check
      _
    $region23: #{mpnn_fwd.1} parent=1 // pred_check_branch
      %60 = sbr.rel (0) target = $region25
    $region24: #{mpnn_fwd.1} parent=1 // pred_region
      %s62 = ssub.s32 512, 512
      %63 = vsyncadd [#allocation9], %s62
      %s64 = sshll.u32 [#allocation8], 4
      %s65 = int_to_ptr.vmem [resolvable:$true] %s64
      %70 = dma.hbm_to_vmem [thread:$0]  %s5, 512, %s65, [#allocation9], 64, 64, 4
    $region25: #{mpnn_fwd.1} parent=1 // pred_fallthru
      _
    // Predicated region
    $region26: #{mpnn_fwd.1} parent=1 // pred_check
      _
    $region27: #{mpnn_fwd.1} parent=1 // pred_check_branch
      %72 = sbr.rel (0) target = $region29
    $region28: #{mpnn_fwd.1} parent=1 // pred_region
      %s74 = ssub.s32 512, 512
      %75 = vsyncadd [#allocation9], %s74
      %s76 = sshll.u32 [#allocation10], 4
      %s77 = int_to_ptr.vmem [resolvable:$true] %s76
      %82 = dma.hbm_to_vmem [thread:$0]  %s6, 512, %s77, [#allocation9], 64, 64, 4
    $region29: #{mpnn_fwd.1} parent=1 // pred_fallthru
      _
    // Predicated region
    $region30: #{mpnn_fwd.1} parent=1 // pred_check
      _
    $region31: #{mpnn_fwd.1} parent=1 // pred_check_branch
      %84 = sbr.rel (0) target = $region33
    $region32: #{mpnn_fwd.1} parent=1 // pred_region
      %s86 = ssub.s32 4096, 4096
      %87 = vsyncadd [#allocation12], %s86
      %s88 = sshll.u32 [#allocation11], 4
      %s89 = int_to_ptr.vmem [resolvable:$true] %s88
      %94 = dma.hbm_to_vmem [thread:$0]  %s7, 4096, %s89, [#allocation12], 256, 256, 16
    $region33: #{mpnn_fwd.1} parent=1 // pred_fallthru
      _
    // Predicated region
    $region34: #{mpnn_fwd.1} parent=1 // pred_check
      _
    $region35: #{mpnn_fwd.1} parent=1 // pred_check_branch
      %96 = sbr.rel (0) target = $region37
    $region36: #{mpnn_fwd.1} parent=1 // pred_region
      %s98 = ssub.s32 64, 64
      %99 = vsyncadd [#allocation12], %s98
      %s101 = sshll.u32 [#allocation13], 4
      %s102 = int_to_ptr.vmem [resolvable:$true] %s101
      %104 = dma.hbm_to_vmem [thread:$0]  %s8, 64, %s102, [#allocation12]
    $region37: #{mpnn_fwd.1} parent=1 // pred_fallthru
      _
    // Predicated region
    $region38: #{mpnn_fwd.1} parent=1 // pred_check
      _
    $region39: #{mpnn_fwd.1} parent=1 // pred_check_branch
      %106 = sbr.rel (0) target = $region41
    $region40: #{mpnn_fwd.1} parent=1 // pred_region
      %107 = dma.done [#allocation3], 128
    $region41: #{mpnn_fwd.1} parent=1 // pred_fallthru
      _
    // Predicated region
    $region42: #{mpnn_fwd.1} parent=1 // pred_check
      _
    $region43: #{mpnn_fwd.1} parent=1 // pred_check_branch
      %109 = sbr.rel (0) target = $region45
    $region44: #{mpnn_fwd.1} parent=1 // pred_region
      %110 = dma.done [#allocation6], 128
    $region45: #{mpnn_fwd.1} parent=1 // pred_fallthru
      _
    // Predicated region
    $region46: #{mpnn_fwd.1} parent=1 // pred_check
      _
    $region47: #{mpnn_fwd.1} parent=1 // pred_check_branch
      %112 = sbr.rel (0) target = $region49
    $region48: #{mpnn_fwd.1} parent=1 // pred_region
      %113 = dma.done [#allocation6], 512
    $region49: #{mpnn_fwd.1} parent=1 // pred_fallthru
      _
    // Predicated region
    $region50: #{mpnn_fwd.1} parent=1 // pred_check
      _
    $region51: #{mpnn_fwd.1} parent=1 // pred_check_branch
      %115 = sbr.rel (0) target = $region53
    $region52: #{mpnn_fwd.1} parent=1 // pred_region
      %116 = dma.done [#allocation9], 512
    $region53: #{mpnn_fwd.1} parent=1 // pred_fallthru
      _
    // Predicated region
    $region54: #{mpnn_fwd.1} parent=1 // pred_check
      _
    $region55: #{mpnn_fwd.1} parent=1 // pred_check_branch
      %118 = sbr.rel (0) target = $region57
    $region56: #{mpnn_fwd.1} parent=1 // pred_region
      %119 = dma.done [#allocation9], 512
    $region57: #{mpnn_fwd.1} parent=1 // pred_fallthru
      _
    // Predicated region
    $region58: #{mpnn_fwd.1} parent=1 // pred_check
      _
    $region59: #{mpnn_fwd.1} parent=1 // pred_check_branch
      %121 = sbr.rel (0) target = $region61
    $region60: #{mpnn_fwd.1} parent=1 // pred_region
      %122 = dma.done [#allocation12], 4096
    $region61: #{mpnn_fwd.1} parent=1 // pred_fallthru
      _
    // Predicated region
    $region62: #{mpnn_fwd.1} parent=1 // pred_check
      _
    $region63: #{mpnn_fwd.1} parent=1 // pred_check_branch
      %124 = sbr.rel (0) target = $region65
    $region64: #{mpnn_fwd.1} parent=1 // pred_region
      %125 = dma.done [#allocation12], 64
    $region65: #{mpnn_fwd.1} parent=1 // pred_fallthru
      _
    %v127 = vlaneseq
    %v128 = vshrl.u32 %v127, 7
    %v129 = vlaneseq
    %v130 = vand.u32 %v129, 127
    %v131 = vand.u32 %v128, 1
    %v132 = vand.u32 %v130, 1
    %vm133 = vcmp.eq.s32.totalorder %v131, %v132
    %v134 = vsel %vm133, 0.0, -1e+30
    %vm135 = vcmp.ne.s32.totalorder %v128, %v130
    %vm136 = vmand %vm133, %vm135
    %v137 = vsel %vm136, 0.0, -1e+30
    %v138 = vld [vmem:[#allocation13] sm:$0x1]
    %v139 = vld [vmem:[#allocation13 + $0x1] sm:$0x1]
    %v140 = vld [vmem:[#allocation13 + $0x2] sm:$0x1]
    %v141 = vlaneseq
    %v142 = vshrl.u32 %v141, 7
    %v143 = vsub.s32 0, %v142
    %v144 = vrot.slane %v140, %v143
    %v145 = vld [vmem:[%s0] sm:$0xff]
    %v146 = vpack.c.bf16 %v145, %v145
    %v147 = vld [vmem:[#allocation2] sm:$0xf]
    %v148 = vld [vmem:[#allocation2 + $0x4] sm:$0xf]
    %v149 = vlaneseq
    %v150 = vshrl.u32 %v149, 7
    %v151 = vsub.s32 0, %v150
    %v152 = vrot.slane %v138, %v151
    %v155 = vunpack.c.l.b16 %v147
    %v156 = vunpack.c.l.b16 %v148
    %v157 = vpack.c.b16 %v156, %v155
    %vm159 = vcmask 130048
    %v161 = vsel %vm159, %v146, 0
    %163 = vmatprep.subr.bf16.mxu0 0
    %164 = vmatpush1.bf16.msra.mxu0 %v157
    %165 = vmatprep.subr.bf16.mxu0 0
    %166 = vmatpush1.bf16.msra.mxu0 0
    %167 = vmatprep.subr.bf16.mxu0 0
    %168 = vmatpush1.bf16.msra.mxu0 0
    %169 = vmatprep.subr.bf16.mxu0 0
    %170 = vmatpush1.bf16.msra.mxu0 0
    %171 = vmatprep.subr.bf16.mxu0 0
    %172 = vmatpush1.bf16.msra.mxu0 0
    %173 = vmatprep.subr.bf16.mxu0 0
    %174 = vmatpush1.bf16.msra.mxu0 0
    %175 = vmatprep.subr.bf16.mxu0 0
    %176 = vmatpush1.bf16.msra.mxu0 0
    %177 = vmatprep.subr.bf16.mxu0 0
    %178 = vmatpush1.bf16.msra.mxu0 0
    %179 = vmatprep.subr.bf16.mxu0 0
    %180 = vmatpush1.bf16.msra.mxu0 0
    %181 = vmatprep.subr.bf16.mxu0 0
    %182 = vmatpush1.bf16.msra.mxu0 0
    %183 = vmatprep.subr.bf16.mxu0 0
    %184 = vmatpush1.bf16.msra.mxu0 0
    %185 = vmatprep.subr.bf16.mxu0 0
    %186 = vmatpush1.bf16.msra.mxu0 0
    %187 = vmatprep.subr.bf16.mxu0 0
    %188 = vmatpush1.bf16.msra.mxu0 0
    %189 = vmatprep.subr.bf16.mxu0 0
    %190 = vmatpush1.bf16.msra.mxu0 0
    %191 = vmatprep.subr.bf16.mxu0 0
    %192 = vmatpush1.bf16.msra.mxu0 0
    %193 = vmatprep.subr.bf16.mxu0 0
    %194 = vmatpush1.bf16.msra.mxu0 0
    %195 = vmatprep.mubr.bf16.mxu0 0
    %196 = vmatmul.mubr.bf16.gmra.mrb[0].mxu0 %v161
    %v197 = vpop.f32.mrb[0].mxu0
    %v198 = vadd.f32 %v152, %v197
    %v199 = vpop.f32.mrb[0].mxu0
    %v200 = vpop.f32.mrb[0].mxu0
    %v201 = vpop.f32.mrb[0].mxu0
    %202 = vdwg.mxu0
    %v203 = vmax.f32 %v198, 0.0
    %v204 = vld [vmem:[%s1] sm:$0xff]
    %v205 = vpack.c.bf16 %v204, %v204
    %v206 = vld [vmem:[#allocation5] sm:$0xf]
    %v207 = vld [vmem:[#allocation5 + $0x4] sm:$0xf]
    %v208 = vlaneseq
    %v209 = vshrl.u32 %v208, 7
    %v210 = vsub.s32 0, %v209
    %v211 = vrot.slane %v139, %v210
    %v214 = vunpack.c.l.b16 %v206
    %v215 = vunpack.c.l.b16 %v207
    %v216 = vpack.c.b16 %v215, %v214
    %v219 = vsel %vm159, %v205, 0
    %221 = vmatprep.subr.bf16.mxu0 0
    %222 = vmatpush1.bf16.msra.mxu0 %v216
    %223 = vmatprep.subr.bf16.mxu0 0
    %224 = vmatpush1.bf16.msra.mxu0 0
    %225 = vmatprep.subr.bf16.mxu0 0
    %226 = vmatpush1.bf16.msra.mxu0 0
    %227 = vmatprep.subr.bf16.mxu0 0
    %228 = vmatpush1.bf16.msra.mxu0 0
    %229 = vmatprep.subr.bf16.mxu0 0
    %230 = vmatpush1.bf16.msra.mxu0 0
    %231 = vmatprep.subr.bf16.mxu0 0
    %232 = vmatpush1.bf16.msra.mxu0 0
    %233 = vmatprep.subr.bf16.mxu0 0
    %234 = vmatpush1.bf16.msra.mxu0 0
    %235 = vmatprep.subr.bf16.mxu0 0
    %236 = vmatpush1.bf16.msra.mxu0 0
    %237 = vmatprep.subr.bf16.mxu0 0
    %238 = vmatpush1.bf16.msra.mxu0 0
    %239 = vmatprep.subr.bf16.mxu0 0
    %240 = vmatpush1.bf16.msra.mxu0 0
    %241 = vmatprep.subr.bf16.mxu0 0
    %242 = vmatpush1.bf16.msra.mxu0 0
    %243 = vmatprep.subr.bf16.mxu0 0
    %244 = vmatpush1.bf16.msra.mxu0 0
    %245 = vmatprep.subr.bf16.mxu0 0
    %246 = vmatpush1.bf16.msra.mxu0 0
    %247 = vmatprep.subr.bf16.mxu0 0
    %248 = vmatpush1.bf16.msra.mxu0 0
    %249 = vmatprep.subr.bf16.mxu0 0
    %250 = vmatpush1.bf16.msra.mxu0 0
    %251 = vmatprep.subr.bf16.mxu0 0
    %252 = vmatpush1.bf16.msra.mxu0 0
    %253 = vmatprep.mubr.bf16.mxu0 0
    %254 = vmatmul.mubr.bf16.gmra.mrb[0].mxu0 %v219
    %v255 = vpop.f32.mrb[0].mxu0
    %v256 = vadd.f32 %v211, %v255
    %v257 = vpop.f32.mrb[0].mxu0
    %v258 = vpop.f32.mrb[0].mxu0
    %v259 = vpop.f32.mrb[0].mxu0
    %260 = vdwg.mxu0
    %v261 = vmax.f32 %v256, 0.0
    %v262 = vpack.c.bf16 %v203, %v203
    %v263 = vpack.c.bf16 %v261, %v261
    %v264 = vld [vmem:[#allocation7] sm:$0xf]
    %v265 = vld [vmem:[#allocation7 + $0x4] sm:$0xf]
    %v266 = vld [vmem:[#allocation7 + $0x8] sm:$0xf]
    %v267 = vld [vmem:[#allocation7 + $0xc] sm:$0xf]
    %v268 = vld [vmem:[#allocation7 + $0x10] sm:$0xf]
    %v269 = vld [vmem:[#allocation7 + $0x14] sm:$0xf]
    %v270 = vld [vmem:[#allocation7 + $0x18] sm:$0xf]
    %v271 = vld [vmem:[#allocation7 + $0x1c] sm:$0xf]
    %v280 = vunpack.c.l.b16 %v264
    %v281 = vunpack.c.l.b16 %v265
    %v282 = vunpack.c.l.b16 %v266
    %v283 = vunpack.c.l.b16 %v267
    %v284 = vunpack.c.l.b16 %v268
    %v285 = vunpack.c.l.b16 %v269
    %v286 = vunpack.c.l.b16 %v270
    %v287 = vunpack.c.l.b16 %v271
    %v288 = vpack.c.b16 %v281, %v280
    %v289 = vpack.c.b16 %v283, %v282
    %v290 = vpack.c.b16 %v285, %v284
    %v291 = vpack.c.b16 %v287, %v286
    %vm296 = vcmask 523264
    %v298 = vsel %vm296, %v262, 0
    %300 = vmatprep.subr.bf16.mxu0 0
    %301 = vmatpush1.bf16.msra.mxu0 %v288
    %302 = vmatprep.subr.bf16.mxu0 0
    %303 = vmatpush1.bf16.msra.mxu0 %v289
    %304 = vmatprep.subr.bf16.mxu0 0
    %305 = vmatpush1.bf16.msra.mxu0 %v290
    %306 = vmatprep.subr.bf16.mxu0 0
    %307 = vmatpush1.bf16.msra.mxu0 %v291
    %308 = vmatprep.subr.bf16.mxu0 0
    %309 = vmatpush1.bf16.msra.mxu0 0
    %310 = vmatprep.subr.bf16.mxu0 0
    %311 = vmatpush1.bf16.msra.mxu0 0
    %312 = vmatprep.subr.bf16.mxu0 0
    %313 = vmatpush1.bf16.msra.mxu0 0
    %314 = vmatprep.subr.bf16.mxu0 0
    %315 = vmatpush1.bf16.msra.mxu0 0
    %316 = vmatprep.subr.bf16.mxu0 0
    %317 = vmatpush1.bf16.msra.mxu0 0
    %318 = vmatprep.subr.bf16.mxu0 0
    %319 = vmatpush1.bf16.msra.mxu0 0
    %320 = vmatprep.subr.bf16.mxu0 0
    %321 = vmatpush1.bf16.msra.mxu0 0
    %322 = vmatprep.subr.bf16.mxu0 0
    %323 = vmatpush1.bf16.msra.mxu0 0
    %324 = vmatprep.subr.bf16.mxu0 0
    %325 = vmatpush1.bf16.msra.mxu0 0
    %326 = vmatprep.subr.bf16.mxu0 0
    %327 = vmatpush1.bf16.msra.mxu0 0
    %328 = vmatprep.subr.bf16.mxu0 0
    %329 = vmatpush1.bf16.msra.mxu0 0
    %330 = vmatprep.subr.bf16.mxu0 0
    %331 = vmatpush1.bf16.msra.mxu0 0
    %332 = vmatprep.mubr.bf16.mxu0 0
    %333 = vmatmul.mubr.bf16.gmra.mrb[0].mxu0 %v298
    %v334 = vpop.f32.mrb[0].mxu0
    %v335 = vadd.f32 0.0, %v334
    %v336 = vpop.f32.mrb[0].mxu0
    %v337 = vpop.f32.mrb[0].mxu0
    %v338 = vpop.f32.mrb[0].mxu0
    %339 = vdwg.mxu0
    %v340 = vpack.c.bf16 %v335, %v335
    %v341 = vld [vmem:[#allocation8] sm:$0xf]
    %v342 = vld [vmem:[#allocation8 + $0x4] sm:$0xf]
    %v343 = vld [vmem:[#allocation8 + $0x8] sm:$0xf]
    %v344 = vld [vmem:[#allocation8 + $0xc] sm:$0xf]
    %v345 = vld [vmem:[#allocation8 + $0x10] sm:$0xf]
    %v346 = vld [vmem:[#allocation8 + $0x14] sm:$0xf]
    %v347 = vld [vmem:[#allocation8 + $0x18] sm:$0xf]
    %v348 = vld [vmem:[#allocation8 + $0x1c] sm:$0xf]
    %v357 = vunpack.c.l.b16 %v341
    %v358 = vunpack.c.l.b16 %v342
    %v359 = vunpack.c.l.b16 %v343
    %v360 = vunpack.c.l.b16 %v344
    %v361 = vunpack.c.l.b16 %v345
    %v362 = vunpack.c.l.b16 %v346
    %v363 = vunpack.c.l.b16 %v347
    %v364 = vunpack.c.l.b16 %v348
    %v365 = vpack.c.b16 %v358, %v357
    %v366 = vpack.c.b16 %v360, %v359
    %v367 = vpack.c.b16 %v362, %v361
    %v368 = vpack.c.b16 %v364, %v363
    %v374 = vsel %vm296, %v263, 0
    %376 = vmatprep.subr.bf16.mxu0 0
    %377 = vmatpush1.bf16.msra.mxu0 %v365
    %378 = vmatprep.subr.bf16.mxu0 0
    %379 = vmatpush1.bf16.msra.mxu0 %v366
    %380 = vmatprep.subr.bf16.mxu0 0
    %381 = vmatpush1.bf16.msra.mxu0 %v367
    %382 = vmatprep.subr.bf16.mxu0 0
    %383 = vmatpush1.bf16.msra.mxu0 %v368
    %384 = vmatprep.subr.bf16.mxu0 0
    %385 = vmatpush1.bf16.msra.mxu0 0
    %386 = vmatprep.subr.bf16.mxu0 0
    %387 = vmatpush1.bf16.msra.mxu0 0
    %388 = vmatprep.subr.bf16.mxu0 0
    %389 = vmatpush1.bf16.msra.mxu0 0
    %390 = vmatprep.subr.bf16.mxu0 0
    %391 = vmatpush1.bf16.msra.mxu0 0
    %392 = vmatprep.subr.bf16.mxu0 0
    %393 = vmatpush1.bf16.msra.mxu0 0
    %394 = vmatprep.subr.bf16.mxu0 0
    %395 = vmatpush1.bf16.msra.mxu0 0
    %396 = vmatprep.subr.bf16.mxu0 0
    %397 = vmatpush1.bf16.msra.mxu0 0
    %398 = vmatprep.subr.bf16.mxu0 0
    %399 = vmatpush1.bf16.msra.mxu0 0
    %400 = vmatprep.subr.bf16.mxu0 0
    %401 = vmatpush1.bf16.msra.mxu0 0
    %402 = vmatprep.subr.bf16.mxu0 0
    %403 = vmatpush1.bf16.msra.mxu0 0
    %404 = vmatprep.subr.bf16.mxu0 0
    %405 = vmatpush1.bf16.msra.mxu0 0
    %406 = vmatprep.subr.bf16.mxu0 0
    %407 = vmatpush1.bf16.msra.mxu0 0
    %408 = vmatprep.mubr.bf16.mxu0 0
    %409 = vmatmul.mubr.bf16.gmra.mrb[0].mxu0 %v374
    %v410 = vpop.f32.mrb[0].mxu0
    %v411 = vadd.f32 0.0, %v410
    %v412 = vpop.f32.mrb[0].mxu0
    %v413 = vpop.f32.mrb[0].mxu0
    %v414 = vpop.f32.mrb[0].mxu0
    %415 = vdwg.mxu0
    %v416 = vpack.c.bf16 %v411, %v411
    %v417 = vld [vmem:[#allocation10] sm:$0xf]
    %v418 = vld [vmem:[#allocation10 + $0x4] sm:$0xf]
    %v419 = vld [vmem:[#allocation10 + $0x8] sm:$0xf]
    %v420 = vld [vmem:[#allocation10 + $0xc] sm:$0xf]
    %v421 = vld [vmem:[#allocation10 + $0x10] sm:$0xf]
    %v422 = vld [vmem:[#allocation10 + $0x14] sm:$0xf]
    %v423 = vld [vmem:[#allocation10 + $0x18] sm:$0xf]
    %v424 = vld [vmem:[#allocation10 + $0x1c] sm:$0xf]
    %v433 = vunpack.c.l.b16 %v417
    %v434 = vunpack.c.l.b16 %v418
    %v435 = vunpack.c.l.b16 %v419
    %v436 = vunpack.c.l.b16 %v420
    %v437 = vunpack.c.l.b16 %v421
    %v438 = vunpack.c.l.b16 %v422
    %v439 = vunpack.c.l.b16 %v423
    %v440 = vunpack.c.l.b16 %v424
    %v441 = vpack.c.b16 %v434, %v433
    %v442 = vpack.c.b16 %v436, %v435
    %v443 = vpack.c.b16 %v438, %v437
    %v444 = vpack.c.b16 %v440, %v439
    %449 = vmatprep.subr.bf16.mxu0 0
    %450 = vmatpush1.bf16.msra.mxu0 %v441
    %451 = vmatprep.subr.bf16.mxu0 0
    %452 = vmatpush1.bf16.msra.mxu0 %v442
    %453 = vmatprep.subr.bf16.mxu0 0
    %454 = vmatpush1.bf16.msra.mxu0 %v443
    %455 = vmatprep.subr.bf16.mxu0 0
    %456 = vmatpush1.bf16.msra.mxu0 %v444
    %457 = vmatprep.subr.bf16.mxu0 0
    %458 = vmatpush1.bf16.msra.mxu0 0
    %459 = vmatprep.subr.bf16.mxu0 0
    %460 = vmatpush1.bf16.msra.mxu0 0
    %461 = vmatprep.subr.bf16.mxu0 0
    %462 = vmatpush1.bf16.msra.mxu0 0
    %463 = vmatprep.subr.bf16.mxu0 0
    %464 = vmatpush1.bf16.msra.mxu0 0
    %465 = vmatprep.subr.bf16.mxu0 0
    %466 = vmatpush1.bf16.msra.mxu0 0
    %467 = vmatprep.subr.bf16.mxu0 0
    %468 = vmatpush1.bf16.msra.mxu0 0
    %469 = vmatprep.subr.bf16.mxu0 0
    %470 = vmatpush1.bf16.msra.mxu0 0
    %471 = vmatprep.subr.bf16.mxu0 0
    %472 = vmatpush1.bf16.msra.mxu0 0
    %473 = vmatprep.subr.bf16.mxu0 0
    %474 = vmatpush1.bf16.msra.mxu0 0
    %475 = vmatprep.subr.bf16.mxu0 0
    %476 = vmatpush1.bf16.msra.mxu0 0
    %477 = vmatprep.subr.bf16.mxu0 0
    %478 = vmatpush1.bf16.msra.mxu0 0
    %479 = vmatprep.subr.bf16.mxu0 0
    %480 = vmatpush1.bf16.msra.mxu0 0
    %481 = vmatprep.mubr.bf16.mxu0 0
    %482 = vmatmul.mubr.bf16.gmra.mrb[0].mxu0 %v374
    %v483 = vpop.f32.mrb[0].mxu0
    %v484 = vadd.f32 0.0, %v483
    %v485 = vpop.f32.mrb[0].mxu0
    %v486 = vpop.f32.mrb[0].mxu0
    %v487 = vpop.f32.mrb[0].mxu0
    %488 = vdwg.mxu0
    %v489 = vpack.c.bf16 %v484, %v484
    %v491 = vsel %vm296, %v340, 0
    %v494 = vsel %vm296, %v416, 0
    %496 = vmatprep.subr.bf16.mxu0 0
    %497 = vmatpush1.bf16.xpose.msra.mxu0 %v494
    %498 = vmatprep.subr.bf16.mxu0 0
    %499 = vmatpush1.bf16.xpose.msra.mxu0 0
    %500 = vmatprep.subr.bf16.mxu0 0
    %501 = vmatpush1.bf16.xpose.msra.mxu0 0
    %502 = vmatprep.subr.bf16.mxu0 0
    %503 = vmatpush1.bf16.xpose.msra.mxu0 0
    %504 = vmatprep.subr.bf16.mxu0 0
    %505 = vmatpush1.bf16.xpose.msra.mxu0 0
    %506 = vmatprep.subr.bf16.mxu0 0
    %507 = vmatpush1.bf16.xpose.msra.mxu0 0
    %508 = vmatprep.subr.bf16.mxu0 0
    %509 = vmatpush1.bf16.xpose.msra.mxu0 0
    %510 = vmatprep.subr.bf16.mxu0 0
    %511 = vmatpush1.bf16.xpose.msra.mxu0 0
    %512 = vmatprep.subr.bf16.mxu0 0
    %513 = vmatpush1.bf16.xpose.msra.mxu0 0
    %514 = vmatprep.subr.bf16.mxu0 0
    %515 = vmatpush1.bf16.xpose.msra.mxu0 0
    %516 = vmatprep.subr.bf16.mxu0 0
    %517 = vmatpush1.bf16.xpose.msra.mxu0 0
    %518 = vmatprep.subr.bf16.mxu0 0
    %519 = vmatpush1.bf16.xpose.msra.mxu0 0
    %520 = vmatprep.subr.bf16.mxu0 0
    %521 = vmatpush1.bf16.xpose.msra.mxu0 0
    %522 = vmatprep.subr.bf16.mxu0 0
    %523 = vmatpush1.bf16.xpose.msra.mxu0 0
    %524 = vmatprep.subr.bf16.mxu0 0
    %525 = vmatpush1.bf16.xpose.msra.mxu0 0
    %526 = vmatprep.subr.bf16.mxu0 0
    %527 = vmatpush1.bf16.xpose.msra.mxu0 0
    %528 = vmatprep.mubr.bf16.mxu0 0
    %529 = vmatmul.mubr.bf16.gmra.mrb[0].mxu0 %v491
    %v530 = vpop.f32.mrb[0].mxu0
    %v531 = vadd.f32 %v134, %v530
    %v532 = vpop.f32.mrb[0].mxu0
    %v533 = vpop.f32.mrb[0].mxu0
    %v534 = vpop.f32.mrb[0].mxu0
    %535 = vdwg.mxu0
    %vm536 = vcmask 64512
    %v537 = vsel %vm536, %v531, -inf
    %538 = vmax.xlane.f32.xlu0 %v537
    %v539 = vpop.xlane.xlu0 %538
    %v540 = vsub.f32 %v531, %v539
    %v541 = vmul.f32 %v540, 1.442695
    %v542 = vpow.pop %v541
    %v543 = vsel %vm536, %v542, 0.0
    %544 = vadd.xlane.f32.xlu0 %v543
    %v545 = vpop.xlane.xlu0 %544
    %v546 = vrcp.pop %v545
    %v547 = vmul.f32 %v542, %v546
    %v548 = vpack.c.bf16 %v547, %v547
    %v550 = vsel %vm536, %v548, 0
    %vm552 = vcmask 1043456
    %v554 = vsel %vm552, %v489, 0
    %556 = vmatprep.subr.bf16.mxu0 0
    %557 = vmatpush1.bf16.msra.mxu0 %v554
    %558 = vmatprep.subr.bf16.mxu0 0
    %559 = vmatpush1.bf16.msra.mxu0 0
    %560 = vmatprep.subr.bf16.mxu0 0
    %561 = vmatpush1.bf16.msra.mxu0 0
    %562 = vmatprep.subr.bf16.mxu0 0
    %563 = vmatpush1.bf16.msra.mxu0 0
    %564 = vmatprep.subr.bf16.mxu0 0
    %565 = vmatpush1.bf16.msra.mxu0 0
    %566 = vmatprep.subr.bf16.mxu0 0
    %567 = vmatpush1.bf16.msra.mxu0 0
    %568 = vmatprep.subr.bf16.mxu0 0
    %569 = vmatpush1.bf16.msra.mxu0 0
    %570 = vmatprep.subr.bf16.mxu0 0
    %571 = vmatpush1.bf16.msra.mxu0 0
    %572 = vmatprep.subr.bf16.mxu0 0
    %573 = vmatpush1.bf16.msra.mxu0 0
    %574 = vmatprep.subr.bf16.mxu0 0
    %575 = vmatpush1.bf16.msra.mxu0 0
    %576 = vmatprep.subr.bf16.mxu0 0
    %577 = vmatpush1.bf16.msra.mxu0 0
    %578 = vmatprep.subr.bf16.mxu0 0
    %579 = vmatpush1.bf16.msra.mxu0 0
    %580 = vmatprep.subr.bf16.mxu0 0
    %581 = vmatpush1.bf16.msra.mxu0 0
    %582 = vmatprep.subr.bf16.mxu0 0
    %583 = vmatpush1.bf16.msra.mxu0 0
    %584 = vmatprep.subr.bf16.mxu0 0
    %585 = vmatpush1.bf16.msra.mxu0 0
    %586 = vmatprep.subr.bf16.mxu0 0
    %587 = vmatpush1.bf16.msra.mxu0 0
    %588 = vmatprep.mubr.bf16.mxu0 0
    %589 = vmatmul.mubr.bf16.gmra.mrb[0].mxu0 %v550
    %v590 = vpop.f32.mrb[0].mxu0
    %v591 = vadd.f32 0.0, %v590
    %v592 = vpop.f32.mrb[0].mxu0
    %v593 = vpop.f32.mrb[0].mxu0
    %v594 = vpop.f32.mrb[0].mxu0
    %595 = vdwg.mxu0
    %v596 = vpack.c.bf16 %v591, %v591
    %v597 = vld [vmem:[#allocation11] sm:$0xff]
    %v598 = vld [vmem:[#allocation11 + $0x8] sm:$0xff]
    %v599 = vld [vmem:[#allocation11 + $0x10] sm:$0xff]
    %v600 = vld [vmem:[#allocation11 + $0x18] sm:$0xff]
    %v601 = vld [vmem:[#allocation11 + $0x20] sm:$0xff]
    %v602 = vld [vmem:[#allocation11 + $0x28] sm:$0xff]
    %v603 = vld [vmem:[#allocation11 + $0x30] sm:$0xff]
    %v604 = vld [vmem:[#allocation11 + $0x38] sm:$0xff]
    %v605 = vld [vmem:[#allocation11 + $0x40] sm:$0xff]
    %v606 = vld [vmem:[#allocation11 + $0x48] sm:$0xff]
    %v607 = vld [vmem:[#allocation11 + $0x50] sm:$0xff]
    %v608 = vld [vmem:[#allocation11 + $0x58] sm:$0xff]
    %v609 = vld [vmem:[#allocation11 + $0x60] sm:$0xff]
    %v610 = vld [vmem:[#allocation11 + $0x68] sm:$0xff]
    %v611 = vld [vmem:[#allocation11 + $0x70] sm:$0xff]
    %v612 = vld [vmem:[#allocation11 + $0x78] sm:$0xff]
    %v613 = vld [vmem:[#allocation11 + $0x80] sm:$0xff]
    %v614 = vld [vmem:[#allocation11 + $0x88] sm:$0xff]
    %v615 = vld [vmem:[#allocation11 + $0x90] sm:$0xff]
    %v616 = vld [vmem:[#allocation11 + $0x98] sm:$0xff]
    %v617 = vld [vmem:[#allocation11 + $0xa0] sm:$0xff]
    %v618 = vld [vmem:[#allocation11 + $0xa8] sm:$0xff]
    %v619 = vld [vmem:[#allocation11 + $0xb0] sm:$0xff]
    %v620 = vld [vmem:[#allocation11 + $0xb8] sm:$0xff]
    %v621 = vld [vmem:[#allocation11 + $0xc0] sm:$0xff]
    %v622 = vld [vmem:[#allocation11 + $0xc8] sm:$0xff]
    %v623 = vld [vmem:[#allocation11 + $0xd0] sm:$0xff]
    %v624 = vld [vmem:[#allocation11 + $0xd8] sm:$0xff]
    %v625 = vld [vmem:[#allocation11 + $0xe0] sm:$0xff]
    %v626 = vld [vmem:[#allocation11 + $0xe8] sm:$0xff]
    %v627 = vld [vmem:[#allocation11 + $0xf0] sm:$0xff]
    %v628 = vld [vmem:[#allocation11 + $0xf8] sm:$0xff]
    %v645 = vunpack.c.l.b16 %v613
    %v646 = vunpack.c.h.b16 %v613
    %v647 = vunpack.c.l.b16 %v614
    %v648 = vunpack.c.h.b16 %v614
    %v649 = vunpack.c.l.b16 %v615
    %v650 = vunpack.c.h.b16 %v615
    %v651 = vunpack.c.l.b16 %v616
    %v652 = vunpack.c.h.b16 %v616
    %v653 = vunpack.c.l.b16 %v617
    %v654 = vunpack.c.h.b16 %v617
    %v655 = vunpack.c.l.b16 %v618
    %v656 = vunpack.c.h.b16 %v618
    %v657 = vunpack.c.l.b16 %v619
    %v658 = vunpack.c.h.b16 %v619
    %v659 = vunpack.c.l.b16 %v620
    %v660 = vunpack.c.h.b16 %v620
    %v661 = vunpack.c.l.b16 %v621
    %v662 = vunpack.c.h.b16 %v621
    %v663 = vunpack.c.l.b16 %v622
    %v664 = vunpack.c.h.b16 %v622
    %v665 = vunpack.c.l.b16 %v623
    %v666 = vunpack.c.h.b16 %v623
    %v667 = vunpack.c.l.b16 %v624
    %v668 = vunpack.c.h.b16 %v624
    %v669 = vunpack.c.l.b16 %v625
    %v670 = vunpack.c.h.b16 %v625
    %v671 = vunpack.c.l.b16 %v626
    %v672 = vunpack.c.h.b16 %v626
    %v673 = vunpack.c.l.b16 %v627
    %v674 = vunpack.c.h.b16 %v627
    %v675 = vunpack.c.l.b16 %v628
    %v676 = vunpack.c.h.b16 %v628
    %v677 = vpack.c.b16 %v649, %v645
    %v678 = vpack.c.b16 %v650, %v646
    %v679 = vpack.c.b16 %v651, %v647
    %v680 = vpack.c.b16 %v652, %v648
    %v681 = vpack.c.b16 %v657, %v653
    %v682 = vpack.c.b16 %v658, %v654
    %v683 = vpack.c.b16 %v659, %v655
    %v684 = vpack.c.b16 %v660, %v656
    %v685 = vpack.c.b16 %v665, %v661
    %v686 = vpack.c.b16 %v666, %v662
    %v687 = vpack.c.b16 %v667, %v663
    %v688 = vpack.c.b16 %v668, %v664
    %v689 = vpack.c.b16 %v673, %v669
    %v690 = vpack.c.b16 %v674, %v670
    %v691 = vpack.c.b16 %v675, %v671
    %v692 = vpack.c.b16 %v676, %v672
    %v710 = vsel %vm296, %v596, 0
    %712 = vmatprep.subr.bf16.mxu0 %v678
    %713 = vmatpush1.bf16.msra.mxu0 %v677
    %714 = vmatprep.subr.bf16.mxu0 %v682
    %715 = vmatpush1.bf16.msra.mxu0 %v681
    %716 = vmatprep.subr.bf16.mxu0 %v686
    %717 = vmatpush1.bf16.msra.mxu0 %v685
    %718 = vmatprep.subr.bf16.mxu0 %v690
    %719 = vmatpush1.bf16.msra.mxu0 %v689
    %720 = vmatprep.subr.bf16.mxu0 0
    %721 = vmatpush1.bf16.msra.mxu0 0
    %722 = vmatprep.subr.bf16.mxu0 0
    %723 = vmatpush1.bf16.msra.mxu0 0
    %724 = vmatprep.subr.bf16.mxu0 0
    %725 = vmatpush1.bf16.msra.mxu0 0
    %726 = vmatprep.subr.bf16.mxu0 0
    %727 = vmatpush1.bf16.msra.mxu0 0
    %728 = vmatprep.subr.bf16.mxu0 0
    %729 = vmatpush1.bf16.msra.mxu0 0
    %730 = vmatprep.subr.bf16.mxu0 0
    %731 = vmatpush1.bf16.msra.mxu0 0
    %732 = vmatprep.subr.bf16.mxu0 0
    %733 = vmatpush1.bf16.msra.mxu0 0
    %734 = vmatprep.subr.bf16.mxu0 0
    %735 = vmatpush1.bf16.msra.mxu0 0
    %736 = vmatprep.subr.bf16.mxu0 0
    %737 = vmatpush1.bf16.msra.mxu0 0
    %738 = vmatprep.subr.bf16.mxu0 0
    %739 = vmatpush1.bf16.msra.mxu0 0
    %740 = vmatprep.subr.bf16.mxu0 0
    %741 = vmatpush1.bf16.msra.mxu0 0
    %742 = vmatprep.subr.bf16.mxu0 0
    %743 = vmatpush1.bf16.msra.mxu0 0
    %744 = vmatprep.mubr.bf16.mxu0 0
    %745 = vmatmul.mubr.bf16.gmra.mrb[0].mxu0 %v710
    %v746 = vpop.f32.mrb[0].mxu0
    %v747 = vadd.f32 0.0, %v746
    %v748 = vpop.f32.mrb[0].mxu0
    %v749 = vadd.f32 0.0, %v748
    %v750 = vpop.f32.mrb[0].mxu0
    %v751 = vpop.f32.mrb[0].mxu0
    %752 = vdwg.mxu0
    %753 = vmatprep.subr.bf16.mxu0 %v680
    %754 = vmatpush1.bf16.msra.mxu0 %v679
    %755 = vmatprep.subr.bf16.mxu0 %v684
    %756 = vmatpush1.bf16.msra.mxu0 %v683
    %757 = vmatprep.subr.bf16.mxu0 %v688
    %758 = vmatpush1.bf16.msra.mxu0 %v687
    %759 = vmatprep.subr.bf16.mxu0 %v692
    %760 = vmatpush1.bf16.msra.mxu0 %v691
    %761 = vmatprep.subr.bf16.mxu0 0
    %762 = vmatpush1.bf16.msra.mxu0 0
    %763 = vmatprep.subr.bf16.mxu0 0
    %764 = vmatpush1.bf16.msra.mxu0 0
    %765 = vmatprep.subr.bf16.mxu0 0
    %766 = vmatpush1.bf16.msra.mxu0 0
    %767 = vmatprep.subr.bf16.mxu0 0
    %768 = vmatpush1.bf16.msra.mxu0 0
    %769 = vmatprep.subr.bf16.mxu0 0
    %770 = vmatpush1.bf16.msra.mxu0 0
    %771 = vmatprep.subr.bf16.mxu0 0
    %772 = vmatpush1.bf16.msra.mxu0 0
    %773 = vmatprep.subr.bf16.mxu0 0
    %774 = vmatpush1.bf16.msra.mxu0 0
    %775 = vmatprep.subr.bf16.mxu0 0
    %776 = vmatpush1.bf16.msra.mxu0 0
    %777 = vmatprep.subr.bf16.mxu0 0
    %778 = vmatpush1.bf16.msra.mxu0 0
    %779 = vmatprep.subr.bf16.mxu0 0
    %780 = vmatpush1.bf16.msra.mxu0 0
    %781 = vmatprep.subr.bf16.mxu0 0
    %782 = vmatpush1.bf16.msra.mxu0 0
    %783 = vmatprep.subr.bf16.mxu0 0
    %784 = vmatpush1.bf16.msra.mxu0 0
    %785 = vmatprep.mubr.bf16.mxu0 0
    %786 = vmatmul.mubr.bf16.gmra.mrb[0].mxu0 %v710
    %v787 = vpop.f32.mrb[0].mxu0
    %v788 = vadd.f32 0.0, %v787
    %v789 = vpop.f32.mrb[0].mxu0
    %v790 = vadd.f32 0.0, %v789
    %v791 = vpop.f32.mrb[0].mxu0
    %v792 = vpop.f32.mrb[0].mxu0
    %793 = vdwg.mxu0
    %v810 = vunpack.c.l.b16 %v597
    %v811 = vunpack.c.h.b16 %v597
    %v812 = vunpack.c.l.b16 %v598
    %v813 = vunpack.c.h.b16 %v598
    %v814 = vunpack.c.l.b16 %v599
    %v815 = vunpack.c.h.b16 %v599
    %v816 = vunpack.c.l.b16 %v600
    %v817 = vunpack.c.h.b16 %v600
    %v818 = vunpack.c.l.b16 %v601
    %v819 = vunpack.c.h.b16 %v601
    %v820 = vunpack.c.l.b16 %v602
    %v821 = vunpack.c.h.b16 %v602
    %v822 = vunpack.c.l.b16 %v603
    %v823 = vunpack.c.h.b16 %v603
    %v824 = vunpack.c.l.b16 %v604
    %v825 = vunpack.c.h.b16 %v604
    %v826 = vunpack.c.l.b16 %v605
    %v827 = vunpack.c.h.b16 %v605
    %v828 = vunpack.c.l.b16 %v606
    %v829 = vunpack.c.h.b16 %v606
    %v830 = vunpack.c.l.b16 %v607
    %v831 = vunpack.c.h.b16 %v607
    %v832 = vunpack.c.l.b16 %v608
    %v833 = vunpack.c.h.b16 %v608
    %v834 = vunpack.c.l.b16 %v609
    %v835 = vunpack.c.h.b16 %v609
    %v836 = vunpack.c.l.b16 %v610
    %v837 = vunpack.c.h.b16 %v610
    %v838 = vunpack.c.l.b16 %v611
    %v839 = vunpack.c.h.b16 %v611
    %v840 = vunpack.c.l.b16 %v612
    %v841 = vunpack.c.h.b16 %v612
    %v842 = vpack.c.b16 %v814, %v810
    %v843 = vpack.c.b16 %v815, %v811
    %v844 = vpack.c.b16 %v816, %v812
    %v845 = vpack.c.b16 %v817, %v813
    %v846 = vpack.c.b16 %v822, %v818
    %v847 = vpack.c.b16 %v823, %v819
    %v848 = vpack.c.b16 %v824, %v820
    %v849 = vpack.c.b16 %v825, %v821
    %v850 = vpack.c.b16 %v830, %v826
    %v851 = vpack.c.b16 %v831, %v827
    %v852 = vpack.c.b16 %v832, %v828
    %v853 = vpack.c.b16 %v833, %v829
    %v854 = vpack.c.b16 %v838, %v834
    %v855 = vpack.c.b16 %v839, %v835
    %v856 = vpack.c.b16 %v840, %v836
    %v857 = vpack.c.b16 %v841, %v837
    %874 = vmatprep.subr.bf16.mxu0 %v843
    %875 = vmatpush1.bf16.msra.mxu0 %v842
    %876 = vmatprep.subr.bf16.mxu0 %v847
    %877 = vmatpush1.bf16.msra.mxu0 %v846
    %878 = vmatprep.subr.bf16.mxu0 %v851
    %879 = vmatpush1.bf16.msra.mxu0 %v850
    %880 = vmatprep.subr.bf16.mxu0 %v855
    %881 = vmatpush1.bf16.msra.mxu0 %v854
    %882 = vmatprep.subr.bf16.mxu0 0
    %883 = vmatpush1.bf16.msra.mxu0 0
    %884 = vmatprep.subr.bf16.mxu0 0
    %885 = vmatpush1.bf16.msra.mxu0 0
    %886 = vmatprep.subr.bf16.mxu0 0
    %887 = vmatpush1.bf16.msra.mxu0 0
    %888 = vmatprep.subr.bf16.mxu0 0
    %889 = vmatpush1.bf16.msra.mxu0 0
    %890 = vmatprep.subr.bf16.mxu0 0
    %891 = vmatpush1.bf16.msra.mxu0 0
    %892 = vmatprep.subr.bf16.mxu0 0
    %893 = vmatpush1.bf16.msra.mxu0 0
    %894 = vmatprep.subr.bf16.mxu0 0
    %895 = vmatpush1.bf16.msra.mxu0 0
    %896 = vmatprep.subr.bf16.mxu0 0
    %897 = vmatpush1.bf16.msra.mxu0 0
    %898 = vmatprep.subr.bf16.mxu0 0
    %899 = vmatpush1.bf16.msra.mxu0 0
    %900 = vmatprep.subr.bf16.mxu0 0
    %901 = vmatpush1.bf16.msra.mxu0 0
    %902 = vmatprep.subr.bf16.mxu0 0
    %903 = vmatpush1.bf16.msra.mxu0 0
    %904 = vmatprep.subr.bf16.mxu0 0
    %905 = vmatpush1.bf16.msra.mxu0 0
    %906 = vmatprep.mubr.bf16.mxu0 0
    %907 = vmatmul.mubr.bf16.gmra.mrb[0].mxu0 %v298
    %v908 = vpop.f32.mrb[0].mxu0
    %v909 = vadd.f32 %v747, %v908
    %v910 = vpop.f32.mrb[0].mxu0
    %v911 = vadd.f32 %v749, %v910
    %v912 = vpop.f32.mrb[0].mxu0
    %v913 = vpop.f32.mrb[0].mxu0
    %914 = vdwg.mxu0
    %915 = vmatprep.subr.bf16.mxu0 %v845
    %916 = vmatpush1.bf16.msra.mxu0 %v844
    %917 = vmatprep.subr.bf16.mxu0 %v849
    %918 = vmatpush1.bf16.msra.mxu0 %v848
    %919 = vmatprep.subr.bf16.mxu0 %v853
    %920 = vmatpush1.bf16.msra.mxu0 %v852
    %921 = vmatprep.subr.bf16.mxu0 %v857
    %922 = vmatpush1.bf16.msra.mxu0 %v856
    %923 = vmatprep.subr.bf16.mxu0 0
    %924 = vmatpush1.bf16.msra.mxu0 0
    %925 = vmatprep.subr.bf16.mxu0 0
    %926 = vmatpush1.bf16.msra.mxu0 0
    %927 = vmatprep.subr.bf16.mxu0 0
    %928 = vmatpush1.bf16.msra.mxu0 0
    %929 = vmatprep.subr.bf16.mxu0 0
    %930 = vmatpush1.bf16.msra.mxu0 0
    %931 = vmatprep.subr.bf16.mxu0 0
    %932 = vmatpush1.bf16.msra.mxu0 0
    %933 = vmatprep.subr.bf16.mxu0 0
    %934 = vmatpush1.bf16.msra.mxu0 0
    %935 = vmatprep.subr.bf16.mxu0 0
    %936 = vmatpush1.bf16.msra.mxu0 0
    %937 = vmatprep.subr.bf16.mxu0 0
    %938 = vmatpush1.bf16.msra.mxu0 0
    %939 = vmatprep.subr.bf16.mxu0 0
    %940 = vmatpush1.bf16.msra.mxu0 0
    %941 = vmatprep.subr.bf16.mxu0 0
    %942 = vmatpush1.bf16.msra.mxu0 0
    %943 = vmatprep.subr.bf16.mxu0 0
    %944 = vmatpush1.bf16.msra.mxu0 0
    %945 = vmatprep.subr.bf16.mxu0 0
    %946 = vmatpush1.bf16.msra.mxu0 0
    %947 = vmatprep.mubr.bf16.mxu0 0
    %948 = vmatmul.mubr.bf16.gmra.mrb[0].mxu0 %v298
    %v949 = vpop.f32.mrb[0].mxu0
    %v950 = vadd.f32 %v788, %v949
    %v951 = vpop.f32.mrb[0].mxu0
    %v952 = vadd.f32 %v790, %v951
    %v953 = vpop.f32.mrb[0].mxu0
    %v954 = vpop.f32.mrb[0].mxu0
    %955 = vdwg.mxu0
    %v956 = vpack.c.bf16 %v909, %v909
    %v957 = vpack.c.bf16 %v911, %v911
    %958 = vmatprep.subr.bf16.mxu0 0
    %959 = vmatpush1.bf16.xpose.msra.mxu0 %v957
    %960 = vmatprep.subr.bf16.mxu0 0
    %961 = vmatpush1.bf16.xpose.msra.mxu0 0
    %962 = vmatprep.subr.bf16.mxu0 0
    %963 = vmatpush1.bf16.xpose.msra.mxu0 0
    %964 = vmatprep.subr.bf16.mxu0 0
    %965 = vmatpush1.bf16.xpose.msra.mxu0 0
    %966 = vmatprep.subr.bf16.mxu0 0
    %967 = vmatpush1.bf16.xpose.msra.mxu0 0
    %968 = vmatprep.subr.bf16.mxu0 0
    %969 = vmatpush1.bf16.xpose.msra.mxu0 0
    %970 = vmatprep.subr.bf16.mxu0 0
    %971 = vmatpush1.bf16.xpose.msra.mxu0 0
    %972 = vmatprep.subr.bf16.mxu0 0
    %973 = vmatpush1.bf16.xpose.msra.mxu0 0
    %974 = vmatprep.subr.bf16.mxu0 0
    %975 = vmatpush1.bf16.xpose.msra.mxu0 0
    %976 = vmatprep.subr.bf16.mxu0 0
    %977 = vmatpush1.bf16.xpose.msra.mxu0 0
    %978 = vmatprep.subr.bf16.mxu0 0
    %979 = vmatpush1.bf16.xpose.msra.mxu0 0
    %980 = vmatprep.subr.bf16.mxu0 0
    %981 = vmatpush1.bf16.xpose.msra.mxu0 0
    %982 = vmatprep.subr.bf16.mxu0 0
    %983 = vmatpush1.bf16.xpose.msra.mxu0 0
    %984 = vmatprep.subr.bf16.mxu0 0
    %985 = vmatpush1.bf16.xpose.msra.mxu0 0
    %986 = vmatprep.subr.bf16.mxu0 0
    %987 = vmatpush1.bf16.xpose.msra.mxu0 0
    %988 = vmatprep.subr.bf16.mxu0 0
    %989 = vmatpush1.bf16.xpose.msra.mxu0 0
    %990 = vmatprep.mubr.bf16.mxu0 0
    %991 = vmatmul.mubr.bf16.gmra.mrb[0].mxu0 %v956
    %v992 = vpop.f32.mrb[0].mxu0
    %v993 = vadd.f32 %v137, %v992
    %v994 = vpop.f32.mrb[0].mxu0
    %v995 = vpop.f32.mrb[0].mxu0
    %v996 = vpop.f32.mrb[0].mxu0
    %997 = vdwg.mxu0
    %v998 = vsel %vm536, %v993, -inf
    %999 = vmax.xlane.f32.xlu0 %v998
    %v1000 = vpop.xlane.xlu0 %999
    %v1001 = vsub.f32 %v993, %v1000
    %v1002 = vmul.f32 %v1001, 1.442695
    %v1003 = vpow.pop %v1002
    %v1004 = vsel %vm536, %v1003, 0.0
    %1005 = vadd.xlane.f32.xlu0 %v1004
    %v1006 = vpop.xlane.xlu0 %1005
    %v1007 = vrcp.pop %v1006
    %v1008 = vmul.f32 %v1003, %v1007
    %v1009 = vpack.c.bf16 %v1008, %v1008
    %v1010 = vpack.c.bf16 %v950, %v950
    %v1012 = vsel %vm536, %v1009, 0
    %v1015 = vsel %vm552, %v1010, 0
    %1017 = vmatprep.subr.bf16.mxu0 0
    %1018 = vmatpush1.bf16.msra.mxu0 %v1015
    %1019 = vmatprep.subr.bf16.mxu0 0
    %1020 = vmatpush1.bf16.msra.mxu0 0
    %1021 = vmatprep.subr.bf16.mxu0 0
    %1022 = vmatpush1.bf16.msra.mxu0 0
    %1023 = vmatprep.subr.bf16.mxu0 0
    %1024 = vmatpush1.bf16.msra.mxu0 0
    %1025 = vmatprep.subr.bf16.mxu0 0
    %1026 = vmatpush1.bf16.msra.mxu0 0
    %1027 = vmatprep.subr.bf16.mxu0 0
    %1028 = vmatpush1.bf16.msra.mxu0 0
    %1029 = vmatprep.subr.bf16.mxu0 0
    %1030 = vmatpush1.bf16.msra.mxu0 0
    %1031 = vmatprep.subr.bf16.mxu0 0
    %1032 = vmatpush1.bf16.msra.mxu0 0
    %1033 = vmatprep.subr.bf16.mxu0 0
    %1034 = vmatpush1.bf16.msra.mxu0 0
    %1035 = vmatprep.subr.bf16.mxu0 0
    %1036 = vmatpush1.bf16.msra.mxu0 0
    %1037 = vmatprep.subr.bf16.mxu0 0
    %1038 = vmatpush1.bf16.msra.mxu0 0
    %1039 = vmatprep.subr.bf16.mxu0 0
    %1040 = vmatpush1.bf16.msra.mxu0 0
    %1041 = vmatprep.subr.bf16.mxu0 0
    %1042 = vmatpush1.bf16.msra.mxu0 0
    %1043 = vmatprep.subr.bf16.mxu0 0
    %1044 = vmatpush1.bf16.msra.mxu0 0
    %1045 = vmatprep.subr.bf16.mxu0 0
    %1046 = vmatpush1.bf16.msra.mxu0 0
    %1047 = vmatprep.subr.bf16.mxu0 0
    %1048 = vmatpush1.bf16.msra.mxu0 0
    %1049 = vmatprep.mubr.bf16.mxu0 0
    %1050 = vmatmul.mubr.bf16.gmra.mrb[0].mxu0 %v1012
    %v1051 = vpop.f32.mrb[0].mxu0
    %v1052 = vadd.f32 0.0, %v1051
    %v1053 = vpop.f32.mrb[0].mxu0
    %v1054 = vpop.f32.mrb[0].mxu0
    %v1055 = vpop.f32.mrb[0].mxu0
    %1056 = vdwg.mxu0
    %v1057 = vadd.f32 %v952, %v1052
    %v1058 = vadd.f32 %v1057, %v144
    %v1059 = vmax.f32 %v1058, 0.0
    %v1060 = vpack.c.bf16 %v1059, %v1059
    %1061 = vmatprep.subr.bf16.mxu0 %v843
    %1062 = vmatpush1.bf16.msra.mxu0 %v842
    %1063 = vmatprep.subr.bf16.mxu0 %v847
    %1064 = vmatpush1.bf16.msra.mxu0 %v846
    %1065 = vmatprep.subr.bf16.mxu0 %v851
    %1066 = vmatpush1.bf16.msra.mxu0 %v850
    %1067 = vmatprep.subr.bf16.mxu0 %v855
    %1068 = vmatpush1.bf16.msra.mxu0 %v854
    %1069 = vmatprep.subr.bf16.mxu0 %v678
    %1070 = vmatpush1.bf16.msra.mxu0 %v677
    %1071 = vmatprep.subr.bf16.mxu0 %v682
    %1072 = vmatpush1.bf16.msra.mxu0 %v681
    %1073 = vmatprep.subr.bf16.mxu0 %v686
    %1074 = vmatpush1.bf16.msra.mxu0 %v685
    %1075 = vmatprep.subr.bf16.mxu0 %v690
    %1076 = vmatpush1.bf16.msra.mxu0 %v689
    %1077 = vmatprep.subr.bf16.mxu0 0
    %1078 = vmatpush1.bf16.msra.mxu0 0
    %1079 = vmatprep.subr.bf16.mxu0 0
    %1080 = vmatpush1.bf16.msra.mxu0 0
    %1081 = vmatprep.subr.bf16.mxu0 0
    %1082 = vmatpush1.bf16.msra.mxu0 0
    %1083 = vmatprep.subr.bf16.mxu0 0
    %1084 = vmatpush1.bf16.msra.mxu0 0
    %1085 = vmatprep.subr.bf16.mxu0 0
    %1086 = vmatpush1.bf16.msra.mxu0 0
    %1087 = vmatprep.subr.bf16.mxu0 0
    %1088 = vmatpush1.bf16.msra.mxu0 0
    %1089 = vmatprep.subr.bf16.mxu0 0
    %1090 = vmatpush1.bf16.msra.mxu0 0
    %1091 = vmatprep.subr.bf16.mxu0 0
    %1092 = vmatpush1.bf16.msra.mxu0 0
    %1093 = vmatprep.mubr.bf16.mxu0 0
    %1094 = vmatmul.mubr.bf16.gmra.mrb[0].mxu0 %v1060
    %v1095 = vpop.f32.mrb[0].mxu0
    %v1096 = vadd.f32 0.0, %v1095
    %v1097 = vpop.f32.mrb[0].mxu0
    %v1098 = vadd.f32 0.0, %v1097
    %v1099 = vpop.f32.mrb[0].mxu0
    %v1100 = vpop.f32.mrb[0].mxu0
    %1101 = vdwg.mxu0
    %1102 = vmatprep.subr.bf16.mxu0 %v845
    %1103 = vmatpush1.bf16.msra.mxu0 %v844
    %1104 = vmatprep.subr.bf16.mxu0 %v849
    %1105 = vmatpush1.bf16.msra.mxu0 %v848
    %1106 = vmatprep.subr.bf16.mxu0 %v853
    %1107 = vmatpush1.bf16.msra.mxu0 %v852
    %1108 = vmatprep.subr.bf16.mxu0 %v857
    %1109 = vmatpush1.bf16.msra.mxu0 %v856
    %1110 = vmatprep.subr.bf16.mxu0 %v680
    %1111 = vmatpush1.bf16.msra.mxu0 %v679
    %1112 = vmatprep.subr.bf16.mxu0 %v684
    %1113 = vmatpush1.bf16.msra.mxu0 %v683
    %1114 = vmatprep.subr.bf16.mxu0 %v688
    %1115 = vmatpush1.bf16.msra.mxu0 %v687
    %1116 = vmatprep.subr.bf16.mxu0 %v692
    %1117 = vmatpush1.bf16.msra.mxu0 %v691
    %1118 = vmatprep.subr.bf16.mxu0 0
    %1119 = vmatpush1.bf16.msra.mxu0 0
    %1120 = vmatprep.subr.bf16.mxu0 0
    %1121 = vmatpush1.bf16.msra.mxu0 0
    %1122 = vmatprep.subr.bf16.mxu0 0
    %1123 = vmatpush1.bf16.msra.mxu0 0
    %1124 = vmatprep.subr.bf16.mxu0 0
    %1125 = vmatpush1.bf16.msra.mxu0 0
    %1126 = vmatprep.subr.bf16.mxu0 0
    %1127 = vmatpush1.bf16.msra.mxu0 0
    %1128 = vmatprep.subr.bf16.mxu0 0
    %1129 = vmatpush1.bf16.msra.mxu0 0
    %1130 = vmatprep.subr.bf16.mxu0 0
    %1131 = vmatpush1.bf16.msra.mxu0 0
    %1132 = vmatprep.subr.bf16.mxu0 0
    %1133 = vmatpush1.bf16.msra.mxu0 0
    %1134 = vmatprep.mubr.bf16.mxu0 0
    %1135 = vmatmul.mubr.bf16.gmra.mrb[0].mxu0 %v1060
    %v1136 = vpop.f32.mrb[0].mxu0
    %v1137 = vadd.f32 0.0, %v1136
    %v1138 = vpop.f32.mrb[0].mxu0
    %v1139 = vadd.f32 0.0, %v1138
    %v1140 = vpop.f32.mrb[0].mxu0
    %v1141 = vpop.f32.mrb[0].mxu0
    %1142 = vdwg.mxu0
    %v1143 = vpack.c.bf16 %v1096, %v1096
    %v1144 = vpack.c.bf16 %v1098, %v1098
    %1145 = vmatprep.subr.bf16.mxu0 0
    %1146 = vmatpush1.bf16.xpose.msra.mxu0 %v1144
    %1147 = vmatprep.subr.bf16.mxu0 0
    %1148 = vmatpush1.bf16.xpose.msra.mxu0 0
    %1149 = vmatprep.subr.bf16.mxu0 0
    %1150 = vmatpush1.bf16.xpose.msra.mxu0 0
    %1151 = vmatprep.subr.bf16.mxu0 0
    %1152 = vmatpush1.bf16.xpose.msra.mxu0 0
    %1153 = vmatprep.subr.bf16.mxu0 0
    %1154 = vmatpush1.bf16.xpose.msra.mxu0 0
    %1155 = vmatprep.subr.bf16.mxu0 0
    %1156 = vmatpush1.bf16.xpose.msra.mxu0 0
    %1157 = vmatprep.subr.bf16.mxu0 0
    %1158 = vmatpush1.bf16.xpose.msra.mxu0 0
    %1159 = vmatprep.subr.bf16.mxu0 0
    %1160 = vmatpush1.bf16.xpose.msra.mxu0 0
    %1161 = vmatprep.subr.bf16.mxu0 0
    %1162 = vmatpush1.bf16.xpose.msra.mxu0 0
    %1163 = vmatprep.subr.bf16.mxu0 0
    %1164 = vmatpush1.bf16.xpose.msra.mxu0 0
    %1165 = vmatprep.subr.bf16.mxu0 0
    %1166 = vmatpush1.bf16.xpose.msra.mxu0 0
    %1167 = vmatprep.subr.bf16.mxu0 0
    %1168 = vmatpush1.bf16.xpose.msra.mxu0 0
    %1169 = vmatprep.subr.bf16.mxu0 0
    %1170 = vmatpush1.bf16.xpose.msra.mxu0 0
    %1171 = vmatprep.subr.bf16.mxu0 0
    %1172 = vmatpush1.bf16.xpose.msra.mxu0 0
    %1173 = vmatprep.subr.bf16.mxu0 0
    %1174 = vmatpush1.bf16.xpose.msra.mxu0 0
    %1175 = vmatprep.subr.bf16.mxu0 0
    %1176 = vmatpush1.bf16.xpose.msra.mxu0 0
    %1177 = vmatprep.mubr.bf16.mxu0 0
    %1178 = vmatmul.mubr.bf16.gmra.mrb[0].mxu0 %v1143
    %v1179 = vpop.f32.mrb[0].mxu0
    %v1180 = vadd.f32 %v137, %v1179
    %v1181 = vpop.f32.mrb[0].mxu0
    %v1182 = vpop.f32.mrb[0].mxu0
    %v1183 = vpop.f32.mrb[0].mxu0
    %1184 = vdwg.mxu0
    %v1185 = vsel %vm536, %v1180, -inf
    %1186 = vmax.xlane.f32.xlu0 %v1185
    %v1187 = vpop.xlane.xlu0 %1186
    %v1188 = vsub.f32 %v1180, %v1187
    %v1189 = vmul.f32 %v1188, 1.442695
    %v1190 = vpow.pop %v1189
    %v1191 = vsel %vm536, %v1190, 0.0
    %1192 = vadd.xlane.f32.xlu0 %v1191
    %v1193 = vpop.xlane.xlu0 %1192
    %v1194 = vrcp.pop %v1193
    %v1195 = vmul.f32 %v1190, %v1194
    %v1196 = vpack.c.bf16 %v1195, %v1195
    %v1197 = vpack.c.bf16 %v1137, %v1137
    %v1199 = vsel %vm536, %v1196, 0
    %v1202 = vsel %vm552, %v1197, 0
    %1204 = vmatprep.subr.bf16.mxu0 0
    %1205 = vmatpush1.bf16.msra.mxu0 %v1202
    %1206 = vmatprep.subr.bf16.mxu0 0
    %1207 = vmatpush1.bf16.msra.mxu0 0
    %1208 = vmatprep.subr.bf16.mxu0 0
    %1209 = vmatpush1.bf16.msra.mxu0 0
    %1210 = vmatprep.subr.bf16.mxu0 0
    %1211 = vmatpush1.bf16.msra.mxu0 0
    %1212 = vmatprep.subr.bf16.mxu0 0
    %1213 = vmatpush1.bf16.msra.mxu0 0
    %1214 = vmatprep.subr.bf16.mxu0 0
    %1215 = vmatpush1.bf16.msra.mxu0 0
    %1216 = vmatprep.subr.bf16.mxu0 0
    %1217 = vmatpush1.bf16.msra.mxu0 0
    %1218 = vmatprep.subr.bf16.mxu0 0
    %1219 = vmatpush1.bf16.msra.mxu0 0
    %1220 = vmatprep.subr.bf16.mxu0 0
    %1221 = vmatpush1.bf16.msra.mxu0 0
    %1222 = vmatprep.subr.bf16.mxu0 0
    %1223 = vmatpush1.bf16.msra.mxu0 0
    %1224 = vmatprep.subr.bf16.mxu0 0
    %1225 = vmatpush1.bf16.msra.mxu0 0
    %1226 = vmatprep.subr.bf16.mxu0 0
    %1227 = vmatpush1.bf16.msra.mxu0 0
    %1228 = vmatprep.subr.bf16.mxu0 0
    %1229 = vmatpush1.bf16.msra.mxu0 0
    %1230 = vmatprep.subr.bf16.mxu0 0
    %1231 = vmatpush1.bf16.msra.mxu0 0
    %1232 = vmatprep.subr.bf16.mxu0 0
    %1233 = vmatpush1.bf16.msra.mxu0 0
    %1234 = vmatprep.subr.bf16.mxu0 0
    %1235 = vmatpush1.bf16.msra.mxu0 0
    %1236 = vmatprep.mubr.bf16.mxu0 0
    %1237 = vmatmul.mubr.bf16.gmra.mrb[0].mxu0 %v1199
    %v1238 = vpop.f32.mrb[0].mxu0
    %v1239 = vadd.f32 0.0, %v1238
    %v1240 = vpop.f32.mrb[0].mxu0
    %v1241 = vpop.f32.mrb[0].mxu0
    %v1242 = vpop.f32.mrb[0].mxu0
    %1243 = vdwg.mxu0
    %v1244 = vadd.f32 %v1139, %v1239
    %v1245 = vadd.f32 %v1244, %v144
    %v1246 = vmax.f32 %v1245, 0.0
    %v1247 = vpack.c.bf16 %v1246, %v1246
    %1248 = vmatprep.subr.bf16.mxu0 %v843
    %1249 = vmatpush1.bf16.msra.mxu0 %v842
    %1250 = vmatprep.subr.bf16.mxu0 %v847
    %1251 = vmatpush1.bf16.msra.mxu0 %v846
    %1252 = vmatprep.subr.bf16.mxu0 %v851
    %1253 = vmatpush1.bf16.msra.mxu0 %v850
    %1254 = vmatprep.subr.bf16.mxu0 %v855
    %1255 = vmatpush1.bf16.msra.mxu0 %v854
    %1256 = vmatprep.subr.bf16.mxu0 %v678
    %1257 = vmatpush1.bf16.msra.mxu0 %v677
    %1258 = vmatprep.subr.bf16.mxu0 %v682
    %1259 = vmatpush1.bf16.msra.mxu0 %v681
    %1260 = vmatprep.subr.bf16.mxu0 %v686
    %1261 = vmatpush1.bf16.msra.mxu0 %v685
    %1262 = vmatprep.subr.bf16.mxu0 %v690
    %1263 = vmatpush1.bf16.msra.mxu0 %v689
    %1264 = vmatprep.subr.bf16.mxu0 0
    %1265 = vmatpush1.bf16.msra.mxu0 0
    %1266 = vmatprep.subr.bf16.mxu0 0
    %1267 = vmatpush1.bf16.msra.mxu0 0
    %1268 = vmatprep.subr.bf16.mxu0 0
    %1269 = vmatpush1.bf16.msra.mxu0 0
    %1270 = vmatprep.subr.bf16.mxu0 0
    %1271 = vmatpush1.bf16.msra.mxu0 0
    %1272 = vmatprep.subr.bf16.mxu0 0
    %1273 = vmatpush1.bf16.msra.mxu0 0
    %1274 = vmatprep.subr.bf16.mxu0 0
    %1275 = vmatpush1.bf16.msra.mxu0 0
    %1276 = vmatprep.subr.bf16.mxu0 0
    %1277 = vmatpush1.bf16.msra.mxu0 0
    %1278 = vmatprep.subr.bf16.mxu0 0
    %1279 = vmatpush1.bf16.msra.mxu0 0
    %1280 = vmatprep.mubr.bf16.mxu0 0
    %1281 = vmatmul.mubr.bf16.gmra.mrb[0].mxu0 %v1247
    %v1282 = vpop.f32.mrb[0].mxu0
    %v1283 = vadd.f32 0.0, %v1282
    %v1284 = vpop.f32.mrb[0].mxu0
    %v1285 = vadd.f32 0.0, %v1284
    %v1286 = vpop.f32.mrb[0].mxu0
    %v1287 = vpop.f32.mrb[0].mxu0
    %1288 = vdwg.mxu0
    %1289 = vmatprep.subr.bf16.mxu0 %v845
    %1290 = vmatpush1.bf16.msra.mxu0 %v844
    %1291 = vmatprep.subr.bf16.mxu0 %v849
    %1292 = vmatpush1.bf16.msra.mxu0 %v848
    %1293 = vmatprep.subr.bf16.mxu0 %v853
    %1294 = vmatpush1.bf16.msra.mxu0 %v852
    %1295 = vmatprep.subr.bf16.mxu0 %v857
    %1296 = vmatpush1.bf16.msra.mxu0 %v856
    %1297 = vmatprep.subr.bf16.mxu0 %v680
    %1298 = vmatpush1.bf16.msra.mxu0 %v679
    %1299 = vmatprep.subr.bf16.mxu0 %v684
    %1300 = vmatpush1.bf16.msra.mxu0 %v683
    %1301 = vmatprep.subr.bf16.mxu0 %v688
    %1302 = vmatpush1.bf16.msra.mxu0 %v687
    %1303 = vmatprep.subr.bf16.mxu0 %v692
    %1304 = vmatpush1.bf16.msra.mxu0 %v691
    %1305 = vmatprep.subr.bf16.mxu0 0
    %1306 = vmatpush1.bf16.msra.mxu0 0
    %1307 = vmatprep.subr.bf16.mxu0 0
    %1308 = vmatpush1.bf16.msra.mxu0 0
    %1309 = vmatprep.subr.bf16.mxu0 0
    %1310 = vmatpush1.bf16.msra.mxu0 0
    %1311 = vmatprep.subr.bf16.mxu0 0
    %1312 = vmatpush1.bf16.msra.mxu0 0
    %1313 = vmatprep.subr.bf16.mxu0 0
    %1314 = vmatpush1.bf16.msra.mxu0 0
    %1315 = vmatprep.subr.bf16.mxu0 0
    %1316 = vmatpush1.bf16.msra.mxu0 0
    %1317 = vmatprep.subr.bf16.mxu0 0
    %1318 = vmatpush1.bf16.msra.mxu0 0
    %1319 = vmatprep.subr.bf16.mxu0 0
    %1320 = vmatpush1.bf16.msra.mxu0 0
    %1321 = vmatprep.mubr.bf16.mxu0 0
    %1322 = vmatmul.mubr.bf16.gmra.mrb[0].mxu0 %v1247
    %v1323 = vpop.f32.mrb[0].mxu0
    %v1324 = vadd.f32 0.0, %v1323
    %v1325 = vpop.f32.mrb[0].mxu0
    %v1326 = vadd.f32 0.0, %v1325
    %v1327 = vpop.f32.mrb[0].mxu0
    %v1328 = vpop.f32.mrb[0].mxu0
    %1329 = vdwg.mxu0
    %v1330 = vpack.c.bf16 %v1283, %v1283
    %v1331 = vpack.c.bf16 %v1285, %v1285
    %1332 = vmatprep.subr.bf16.mxu0 0
    %1333 = vmatpush1.bf16.xpose.msra.mxu0 %v1331
    %1334 = vmatprep.subr.bf16.mxu0 0
    %1335 = vmatpush1.bf16.xpose.msra.mxu0 0
    %1336 = vmatprep.subr.bf16.mxu0 0
    %1337 = vmatpush1.bf16.xpose.msra.mxu0 0
    %1338 = vmatprep.subr.bf16.mxu0 0
    %1339 = vmatpush1.bf16.xpose.msra.mxu0 0
    %1340 = vmatprep.subr.bf16.mxu0 0
    %1341 = vmatpush1.bf16.xpose.msra.mxu0 0
    %1342 = vmatprep.subr.bf16.mxu0 0
    %1343 = vmatpush1.bf16.xpose.msra.mxu0 0
    %1344 = vmatprep.subr.bf16.mxu0 0
    %1345 = vmatpush1.bf16.xpose.msra.mxu0 0
    %1346 = vmatprep.subr.bf16.mxu0 0
    %1347 = vmatpush1.bf16.xpose.msra.mxu0 0
    %1348 = vmatprep.subr.bf16.mxu0 0
    %1349 = vmatpush1.bf16.xpose.msra.mxu0 0
    %1350 = vmatprep.subr.bf16.mxu0 0
    %1351 = vmatpush1.bf16.xpose.msra.mxu0 0
    %1352 = vmatprep.subr.bf16.mxu0 0
    %1353 = vmatpush1.bf16.xpose.msra.mxu0 0
    %1354 = vmatprep.subr.bf16.mxu0 0
    %1355 = vmatpush1.bf16.xpose.msra.mxu0 0
    %1356 = vmatprep.subr.bf16.mxu0 0
    %1357 = vmatpush1.bf16.xpose.msra.mxu0 0
    %1358 = vmatprep.subr.bf16.mxu0 0
    %1359 = vmatpush1.bf16.xpose.msra.mxu0 0
    %1360 = vmatprep.subr.bf16.mxu0 0
    %1361 = vmatpush1.bf16.xpose.msra.mxu0 0
    %1362 = vmatprep.subr.bf16.mxu0 0
    %1363 = vmatpush1.bf16.xpose.msra.mxu0 0
    %1364 = vmatprep.mubr.bf16.mxu0 0
    %1365 = vmatmul.mubr.bf16.gmra.mrb[0].mxu0 %v1330
    %v1366 = vpop.f32.mrb[0].mxu0
    %v1367 = vadd.f32 %v137, %v1366
    %v1368 = vpop.f32.mrb[0].mxu0
    %v1369 = vpop.f32.mrb[0].mxu0
    %v1370 = vpop.f32.mrb[0].mxu0
    %1371 = vdwg.mxu0
    %v1372 = vsel %vm536, %v1367, -inf
    %1373 = vmax.xlane.f32.xlu0 %v1372
    %v1374 = vpop.xlane.xlu0 %1373
    %v1375 = vsub.f32 %v1367, %v1374
    %v1376 = vmul.f32 %v1375, 1.442695
    %v1377 = vpow.pop %v1376
    %v1378 = vsel %vm536, %v1377, 0.0
    %1379 = vadd.xlane.f32.xlu0 %v1378
    %v1380 = vpop.xlane.xlu0 %1379
    %v1381 = vrcp.pop %v1380
    %v1382 = vmul.f32 %v1377, %v1381
    %v1383 = vpack.c.bf16 %v1382, %v1382
    %v1384 = vpack.c.bf16 %v1324, %v1324
    %v1386 = vsel %vm536, %v1383, 0
    %v1389 = vsel %vm552, %v1384, 0
    %1391 = vmatprep.subr.bf16.mxu0 0
    %1392 = vmatpush1.bf16.msra.mxu0 %v1389
    %1393 = vmatprep.subr.bf16.mxu0 0
    %1394 = vmatpush1.bf16.msra.mxu0 0
    %1395 = vmatprep.subr.bf16.mxu0 0
    %1396 = vmatpush1.bf16.msra.mxu0 0
    %1397 = vmatprep.subr.bf16.mxu0 0
    %1398 = vmatpush1.bf16.msra.mxu0 0
    %1399 = vmatprep.subr.bf16.mxu0 0
    %1400 = vmatpush1.bf16.msra.mxu0 0
    %1401 = vmatprep.subr.bf16.mxu0 0
    %1402 = vmatpush1.bf16.msra.mxu0 0
    %1403 = vmatprep.subr.bf16.mxu0 0
    %1404 = vmatpush1.bf16.msra.mxu0 0
    %1405 = vmatprep.subr.bf16.mxu0 0
    %1406 = vmatpush1.bf16.msra.mxu0 0
    %1407 = vmatprep.subr.bf16.mxu0 0
    %1408 = vmatpush1.bf16.msra.mxu0 0
    %1409 = vmatprep.subr.bf16.mxu0 0
    %1410 = vmatpush1.bf16.msra.mxu0 0
    %1411 = vmatprep.subr.bf16.mxu0 0
    %1412 = vmatpush1.bf16.msra.mxu0 0
    %1413 = vmatprep.subr.bf16.mxu0 0
    %1414 = vmatpush1.bf16.msra.mxu0 0
    %1415 = vmatprep.subr.bf16.mxu0 0
    %1416 = vmatpush1.bf16.msra.mxu0 0
    %1417 = vmatprep.subr.bf16.mxu0 0
    %1418 = vmatpush1.bf16.msra.mxu0 0
    %1419 = vmatprep.subr.bf16.mxu0 0
    %1420 = vmatpush1.bf16.msra.mxu0 0
    %1421 = vmatprep.subr.bf16.mxu0 0
    %1422 = vmatpush1.bf16.msra.mxu0 0
    %1423 = vmatprep.mubr.bf16.mxu0 0
    %1424 = vmatmul.mubr.bf16.gmra.mrb[0].mxu0 %v1386
    %v1425 = vpop.f32.mrb[0].mxu0
    %v1426 = vadd.f32 0.0, %v1425
    %v1427 = vpop.f32.mrb[0].mxu0
    %v1428 = vpop.f32.mrb[0].mxu0
    %v1429 = vpop.f32.mrb[0].mxu0
    %1430 = vdwg.mxu0
    %v1431 = vadd.f32 %v1326, %v1426
    %v1432 = vadd.f32 %v1431, %v144
    %v1433 = vmax.f32 %v1432, 0.0
    %1434 = vst [vmem:[#allocation14] sm:$0xff] %v1433
    // Predicated region
    $region66: #{mpnn_fwd.1} parent=1 // pred_check
      _
    $region67: #{mpnn_fwd.1} parent=1 // pred_check_branch
      %1436 = sbr.rel (0) target = $region69
    $region68: #{mpnn_fwd.1} parent=1 // pred_region
      %s1438 = ssub.s32 128, 128
      %1439 = vsyncadd [#allocation4], %s1438
      %s1441 = sshll.u32 [#allocation14], 4
      %s1442 = int_to_ptr.vmem [resolvable:$true] %s1441
      %1444 = dma.vmem_to_hbm [thread:$0]  %s1442, 128, %s9, [#allocation4]
    $region69: #{mpnn_fwd.1} parent=1 // pred_fallthru
      _
    // Predicated region
    $region70: #{mpnn_fwd.1} parent=1 // pred_check
      _
    $region71: #{mpnn_fwd.1} parent=1 // pred_check_branch
      %1446 = sbr.rel (0) target = $region73
    $region72: #{mpnn_fwd.1} parent=1 // pred_region
      %1447 = dma.done [#allocation4], 128
    $region73: #{mpnn_fwd.1} parent=1 // pred_fallthru
      _
    %1448 = vsyncpa [#allocation3], 1
    %1449 = vsyncpa [#allocation6], 1
    %1450 = vsyncpa [#allocation9], 1
    %1451 = vsyncpa [#allocation12], 1
    %1452 = vsyncpa [#allocation4], 1

</llo_original>
